<compile_context>
chip_gen: v6e
topology: v6e:2x2x1
jax: 0.10.0
libtpu: 0.0.40
codegen_flags: <defaults>
</compile_context>

<pallas_src>
import functools
from typing import NamedTuple

import numpy as np
import jax
import jax.numpy as jnp
from jax.experimental import pallas as pl
from jax.experimental.pallas import tpu as pltpu


def _round_up(v, m):
    return (v + m - 1) // m * m


class _FusedMeta(NamedTuple):
    cin: int    # 2 * in_ch   (real + imag branches stacked)
    c1: int     # 2 * start_chan*2
    c2: int     # 2 * start_chan*4
    nh: int     # 2 * n_hidden
    cout: int   # 8
    r1: int     # row offsets of the packed weight/bias slabs
    r2: int
    rf: int
    rc: int


# ----------------------------------------------------------------------------
# Fused Pallas kernel: conv1 -> conv2 -> fc1 -> (fc2 + concat) for BOTH XNet
# branches, TB batch elements per grid step folded into the lane axis.
# ----------------------------------------------------------------------------
def _xxnet_fused_kernel(x_ref, w_ref, b_ref, m_ref, o_ref, *, H, W, meta):
    N = x_ref.shape[1]                    # TB * H * W  (lane axis)
    cd = w_ref.dtype                      # MXU operand dtype (f32 or bf16)
    x = x_ref[...]                        # (cin, N) float32

    # The 9 border masks, loaded once and reused by both convs.
    masks = [m_ref[t:t + 1, :] for t in range(9)]
    taps = [(dy, dx) for dy in (-1, 0, 1) for dx in (-1, 0, 1)]

    def conv3x3(a, w, b):
        """3x3 'same' conv on the folded (channels, TB*H*W) layout as ONE
        im2col matmul.  Lane shifts via pltpu.roll (XLU); the precomputed
        border masks zero every lane the roll wraps (image and batch edges)."""
        cols = []
        for t, (dy, dx) in enumerate(taps):
            s = dy * W + dx
            if s == 0:
                cols.append(a)                       # centre tap: mask is all ones
            else:
                y = pltpu.roll(a, shift=(-s) % N, axis=1)
                cols.append(y * masks[t])
        patches = jnp.concatenate(cols, axis=0)      # (9*cin_a, N) f32
        acc = jnp.dot(w, patches.astype(cd), preferred_element_type=jnp.float32)
        return jnp.maximum(acc + b, 0.0)             # (cout_a, N) f32

    m = meta
    w1 = w_ref[m.r1:m.r1 + m.c1, 0:9 * m.cin]
    w2 = w_ref[m.r2:m.r2 + m.c2, 0:9 * m.c1]
    wf = w_ref[m.rf:m.rf + m.nh, 0:m.c2]
    wc = w_ref[m.rc:m.rc + m.cout, 0:m.nh]
    b1 = b_ref[m.r1:m.r1 + m.c1, :]
    b2 = b_ref[m.r2:m.r2 + m.c2, :]
    bf = b_ref[m.rf:m.rf + m.nh, :]
    bc = b_ref[m.rc:m.rc + m.cout, :]

    a1 = conv3x3(x, w1, b1)                          # (c1, N)
    a2 = conv3x3(a1, w2, b2)                         # (c2, N)

    # Per-pixel MLP; fc2 of both branches + concat Linear(2->1) are pre-folded
    # into (wc, bc) by the wrapper.
    h = jnp.dot(wf, a2.astype(cd), preferred_element_type=jnp.float32)
    h = jnp.maximum(h + bf, 0.0)                     # (nh, N)
    out = jnp.dot(wc, h.astype(cd), preferred_element_type=jnp.float32) + bc
    o_ref[...] = out.astype(o_ref.dtype)


# ----------------------------------------------------------------------------
# One-time parameter preparation: branch merge, fc2+concat folding, packing.
# ----------------------------------------------------------------------------
def _prepare_fused_params(params, compute_dtype=jnp.float32):
    pr = params["xnet_real_real"]
    pi = params["xnet_imag_real"]
    wb = params["concat_wb"]                 # (3,) = [w_real, w_imag, bias]

    def conv_bd(wr, wi):
        # (3,3,ci,co) x2 -> block-diag -> (2co, 9*2ci); columns ordered (dy,dx,cin)
        kh, kw, ci, co = wr.shape
        z = jnp.zeros((kh, kw, ci, co), wr.dtype)
        w = jnp.concatenate([jnp.concatenate([wr, z], axis=3),
                             jnp.concatenate([z, wi], axis=3)], axis=2)
        return w.reshape(kh * kw * 2 * ci, 2 * co).T

    def lin_bd(wr, wi):
        # (K,N) x2 -> block-diag (2K,2N) -> transposed (2N,2K)
        k, n = wr.shape
        z = jnp.zeros((k, n), wr.dtype)
        w = jnp.concatenate([jnp.concatenate([wr, z], axis=1),
                             jnp.concatenate([z, wi], axis=1)], axis=0)
        return w.T

    w1 = conv_bd(pr["cw1"], pi["cw1"])                                   # (16, 144)
    w2 = conv_bd(pr["cw2"], pi["cw2"])                                   # (32, 144)
    wf = lin_bd(pr["fw1"], pi["fw1"])                                    # (64, 32)
    # Fold fc2 of both branches + concat Linear(2->1) into one matmul.
    wc = jnp.concatenate([wb[0] * pr["fw2"], wb[1] * pi["fw2"]], axis=0).T   # (8, 64)
    b1 = jnp.concatenate([pr["cb1"], pi["cb1"]])
    b2 = jnp.concatenate([pr["cb2"], pi["cb2"]])
    bf = jnp.concatenate([pr["fb1"], pi["fb1"]])
    bc = wb[0] * pr["fb2"] + wb[1] * pi["fb2"] + wb[2]

    mats = [w1, w2, wf, wc]
    biases = [b1, b2, bf, bc]
    max_cols = max(mm.shape[1] for mm in mats)
    offs, r = [], 0
    for mm in mats:
        r = _round_up(r, 8)
        offs.append(r)
        r += mm.shape[0]
    total_rows = _round_up(r, 8)

    w_pack = jnp.zeros((total_rows, max_cols), compute_dtype)
    b_pack = jnp.zeros((total_rows, 1), jnp.float32)
    for off, mm, bb in zip(offs, mats, biases):
        w_pack = w_pack.at[off:off + mm.shape[0], 0:mm.shape[1]].set(
            mm.astype(compute_dtype))
        b_pack = b_pack.at[off:off + bb.shape[0], 0].set(bb.astype(jnp.float32))

    meta = _FusedMeta(
        cin=2 * pr["cw1"].shape[2], c1=2 * pr["cw1"].shape[3],
        c2=2 * pr["cw2"].shape[3], nh=2 * pr["fw1"].shape[1],
        cout=pr["fw2"].shape[1],
        r1=offs[0], r2=offs[1], rf=offs[2], rc=offs[3])
    return w_pack, b_pack, meta


def _tap_border_masks(H, W, tb):
    """(9, tb*H*W) f32 masks for the 3x3 taps (zero at image borders / wraps)."""
    hw = H * W
    r = np.arange(hw) // W
    c = np.arange(hw) % W
    rows = []
    for dy in (-1, 0, 1):
        for dx in (-1, 0, 1):
            m = ((r + dy >= 0) & (r + dy < H) & (c + dx >= 0) & (c + dx < W))
            rows.append(np.tile(m.astype(np.float32), tb))
    return np.stack(rows, axis=0)


# ----------------------------------------------------------------------------
# Forward wrapper (layout plumbing + pallas_call)
# ----------------------------------------------------------------------------
def _xxnet_forward_impl(x_nchw, w_pack, b_pack, meta, *, tb):
    B, C, H, W = x_nchw.shape
    HW = H * W
    assert C == meta.cin, (C, meta.cin)
    assert HW % 128 == 0, "H*W must be a multiple of 128 (lane axis)"
    tb = max(1, min(tb, B))
    bp = pl.cdiv(B, tb) * tb                 # batch padded to a multiple of tb
    n_steps = bp // tb
    nlane = tb * HW

    x3 = x_nchw.reshape(B, C, HW)
    if bp != B:
        x3 = jnp.pad(x3, ((0, bp - B), (0, 0), (0, 0)))
    # Lane-dense fold of batch into the spatial axis (layout plumbing only).
    x_cn = jnp.transpose(x3, (1, 0, 2)).reshape(C, bp * HW)

    masks_np = _tap_border_masks(H, W, tb)   # (9, tb*HW), trace-time constant
    masks = jnp.asarray(masks_np)

    flops = 2 * bp * HW * (meta.c1 * 9 * meta.cin + meta.c2 * 9 * meta.c1
                           + meta.nh * meta.c2 + meta.cout * meta.nh)
    bytes_accessed = (4 * bp * HW * (C + meta.cout)
                      + int(w_pack.nbytes) + int(b_pack.nbytes)
                      + int(masks_np.nbytes))

    kern = functools.partial(_xxnet_fused_kernel, H=H, W=W, meta=meta)
    resident = lambda: pl.BlockSpec(memory_space=pltpu.MemorySpace.VMEM)
    out = pl.pallas_call(
        kern,
        out_shape=jax.ShapeDtypeStruct((meta.cout, bp * HW), x_nchw.dtype),
        grid=(n_steps,),
        in_specs=[pl.BlockSpec((C, nlane), lambda b: (0, b)),
                  resident(), resident(), resident()],
        out_specs=pl.BlockSpec((meta.cout, nlane), lambda b: (0, b)),
        compiler_params=pltpu.CompilerParams(
            dimension_semantics=("parallel",)),
        cost_estimate=pl.CostEstimate(flops=int(flops), transcendentals=0,
                                      bytes_accessed=int(bytes_accessed)),
    )(x_cn, w_pack, b_pack, masks)

    out = out.reshape(meta.cout, bp, HW).transpose(1, 0, 2)[:B]
    return out.reshape(B, meta.cout, H, W)


def make_xxnet_forward(params, *, compute_dtype=jnp.float32, tb=8):
    """Prepares fused operands ONCE (hoisted out of the per-call path) and
    returns a jitted forward: (B, 16, H, W) -> (B, 8, H, W)."""
    w_pack, b_pack, meta = _prepare_fused_params(params, compute_dtype)

    def fwd(x):
        return _xxnet_forward_impl(x, w_pack, b_pack, meta, tb=tb)

    return jax.jit(fwd)


# ----------------------------------------------------------------------------
# Pure-JAX reference (for correctness check only).  compute_dtype lets the
# reference emulate the kernel's bf16 MXU-operand mode exactly.
# ----------------------------------------------------------------------------
def _reference_forward(x_nchw, params, compute_dtype=jnp.float32):
    cd = compute_dtype
    hp = jax.lax.Precision.HIGHEST

    def conv(h, w, b):
        y = jax.lax.conv_general_dilated(
            h.astype(cd), w.astype(cd), (1, 1), "SAME",
            dimension_numbers=("NCHW", "HWIO", "NCHW"),
            precision=hp, preferred_element_type=jnp.float32)
        return jnp.maximum(y + b[None, :, None, None], 0.0)

    def xnet(h, p):
        h = conv(h, p["cw1"], p["cb1"])
        h = conv(h, p["cw2"], p["cb2"])
        hf = jnp.transpose(h, (0, 2, 3, 1))
        hf = jnp.maximum(
            jnp.matmul(hf.astype(cd), p["fw1"].astype(cd), precision=hp,
                       preferred_element_type=jnp.float32) + p["fb1"], 0.0)
        hf = jnp.matmul(hf.astype(cd), p["fw2"].astype(cd), precision=hp,
                        preferred_element_type=jnp.float32) + p["fb2"]
        return jnp.transpose(hf, (0, 3, 1, 2))

    o1 = xnet(x_nchw[:, :8], params["xnet_real_real"])
    o2 = xnet(x_nchw[:, 8:16], params["xnet_imag_real"])
    wb = params["concat_wb"]
    return wb[0] * o1 + wb[1] * o2 + wb[2]


# ----------------------------------------------------------------------------
# Deterministic parameter construction
# ----------------------------------------------------------------------------
def init_xnet_params(key, in_ch, start_chan, n_hidden, out_ch):
    c1 = start_chan * 2
    c2 = start_chan * 4
    ks = jax.random.split(key, 8)

    def w(k, shape, fan_in):
        return jax.random.normal(k, shape, jnp.float32) * (1.0 / float(fan_in) ** 0.5)

    return {
        "cw1": w(ks[0], (3, 3, in_ch, c1), 9 * in_ch),
        "cb1": jnp.zeros((c1,), jnp.float32),
        "cw2": w(ks[1], (3, 3, c1, c2), 9 * c1),
        "cb2": jnp.zeros((c2,), jnp.float32),
        "fw1": w(ks[2], (c2, n_hidden), c2),
        "fb1": 0.01 * jax.random.normal(ks[3], (n_hidden,), jnp.float32),
        "fw2": w(ks[4], (n_hidden, out_ch), n_hidden),
        "fb2": 0.01 * jax.random.normal(ks[5], (out_ch,), jnp.float32),
    }


def init_xxnet_params(key, n_pool_layers=3, start_chan=4, n_hidden=32):
    # n_concat kept for parity with the reference module (unused in forward).
    n_concat = int(start_chan / 2 * 2 ** n_pool_layers * 8)  # noqa: F841
    k1, k2, k3 = jax.random.split(key, 3)
    concat_w = jax.random.normal(k3, (2,), jnp.float32) * 0.5    # Linear(2, 1).weight
    concat_b = jnp.zeros((1,), jnp.float32)                      # Linear(2, 1).bias
    return {
        "xnet_real_real": init_xnet_params(k1, 8, start_chan, n_hidden, 8),
        "xnet_imag_real": init_xnet_params(k2, 8, start_chan, n_hidden, 8),
        "concat_wb": jnp.concatenate([concat_w, concat_b]),      # [w_real, w_imag, b]
    }


# ----------------------------------------------------------------------------
if __name__ == "__main__":
    key = jax.random.PRNGKey(0)
    kx, kx2, kp = jax.random.split(key, 3)
    params = init_xxnet_params(kp, n_pool_layers=3, start_chan=4, n_hidden=32)

    # --- Run 1: f32 MXU operands, B=2, TB=2 --------------------------------
    B, C, H, W = 2, 16, 16, 16
    x = jax.random.normal(kx, (B, C, H, W), jnp.float32)
    fwd_f32 = make_xxnet_forward(params, compute_dtype=jnp.float32, tb=2)
    out = jax.block_until_ready(fwd_f32(x))
    assert out.shape == (B, 8, H, W), out.shape
    assert bool(jnp.all(jnp.isfinite(out)))
    ref = _reference_forward(x, params, compute_dtype=jnp.float32)
    err = float(jnp.max(jnp.abs(out - ref)))
    # Bound covers either fp32 MXU pass-count the Mosaic lowering picks vs the
    # HIGHEST-precision XLA reference; mask/shift/offset bugs produce O(0.1+)
    # errors, so this still catches them.  The tighter structural check is the
    # bf16 run below, where operand rounding is identical on both sides.
    assert err < 3e-2, f"f32 max abs error vs reference: {err}"

    # --- Run 2: bf16 MXU operands, B=5 (padded to 8), TB=4 (grid of 2) ------
    B2 = 5
    x2 = jax.random.normal(kx2, (B2, C, H, W), jnp.float32)
    fwd_bf16 = make_xxnet_forward(params, compute_dtype=jnp.bfloat16, tb=4)
    out2 = jax.block_until_ready(fwd_bf16(x2))
    assert out2.shape == (B2, 8, H, W), out2.shape
    assert bool(jnp.all(jnp.isfinite(out2)))
    ref2 = _reference_forward(x2, params, compute_dtype=jnp.bfloat16)
    err2 = float(jnp.max(jnp.abs(out2 - ref2)))
    assert err2 < 2e-2, f"bf16 max abs error vs reference: {err2}"

    print("KERNEL_OK")
</pallas_src>

<mosaic_0001>
module attributes {stable_mosaic.version = 11 : i64} {
  func.func @_xxnet_fused_kernel(%arg0: i32, %arg1: memref<16x512xf32, #tpu.memory_space<vmem>>, %arg2: memref<120x144xf32, #tpu.memory_space<vmem>>, %arg3: memref<120x1xf32, #tpu.memory_space<vmem>>, %arg4: memref<9x512xf32, #tpu.memory_space<vmem>>, %arg5: memref<8x512xf32, #tpu.memory_space<vmem>>) attributes {dimension_semantics = [#tpu.dimension_semantics<parallel>], iteration_bounds = array<i64: 1>, scalar_prefetch = 0 : i64, scratch_operands = 0 : i64, tpu.core_type = #tpu.core_type<tc>, window_params = [{transform_indices = @transform_0, window_bounds = array<i64: 16, 512>}, {pipeline_mode = #tpu.pipeline_mode<synchronous>, transform_indices = @transform_1, window_bounds = array<i64: 120, 144>}, {pipeline_mode = #tpu.pipeline_mode<synchronous>, transform_indices = @transform_2, window_bounds = array<i64: 120, 1>}, {pipeline_mode = #tpu.pipeline_mode<synchronous>, transform_indices = @transform_3, window_bounds = array<i64: 9, 512>}, {transform_indices = @transform_4, window_bounds = array<i64: 8, 512>}]} {
    %c0 = arith.constant 0 : index
    %c0_0 = arith.constant 0 : index
    %0 = vector.load %arg1[%c0, %c0_0] : memref<16x512xf32, #tpu.memory_space<vmem>>, vector<16x512xf32>
    %c0_1 = arith.constant 0 : index
    %c0_2 = arith.constant 0 : index
    %1 = vector.load %arg4[%c0_1, %c0_2] : memref<9x512xf32, #tpu.memory_space<vmem>>, vector<1x512xf32>
    %c1 = arith.constant 1 : index
    %c0_3 = arith.constant 0 : index
    %2 = vector.load %arg4[%c1, %c0_3] : memref<9x512xf32, #tpu.memory_space<vmem>>, vector<1x512xf32>
    %c2 = arith.constant 2 : index
    %c0_4 = arith.constant 0 : index
    %3 = vector.load %arg4[%c2, %c0_4] : memref<9x512xf32, #tpu.memory_space<vmem>>, vector<1x512xf32>
    %c3 = arith.constant 3 : index
    %c0_5 = arith.constant 0 : index
    %4 = vector.load %arg4[%c3, %c0_5] : memref<9x512xf32, #tpu.memory_space<vmem>>, vector<1x512xf32>
    %c5 = arith.constant 5 : index
    %c0_6 = arith.constant 0 : index
    %5 = vector.load %arg4[%c5, %c0_6] : memref<9x512xf32, #tpu.memory_space<vmem>>, vector<1x512xf32>
    %c6 = arith.constant 6 : index
    %c0_7 = arith.constant 0 : index
    %6 = vector.load %arg4[%c6, %c0_7] : memref<9x512xf32, #tpu.memory_space<vmem>>, vector<1x512xf32>
    %c7 = arith.constant 7 : index
    %c0_8 = arith.constant 0 : index
    %7 = vector.load %arg4[%c7, %c0_8] : memref<9x512xf32, #tpu.memory_space<vmem>>, vector<1x512xf32>
    %c8 = arith.constant 8 : index
    %c0_9 = arith.constant 0 : index
    %8 = vector.load %arg4[%c8, %c0_9] : memref<9x512xf32, #tpu.memory_space<vmem>>, vector<1x512xf32>
    %c0_10 = arith.constant 0 : index
    %c0_11 = arith.constant 0 : index
    %9 = vector.load %arg2[%c0_10, %c0_11] : memref<120x144xf32, #tpu.memory_space<vmem>>, vector<16x144xf32>
    %c16 = arith.constant 16 : index
    %c0_12 = arith.constant 0 : index
    %10 = vector.load %arg2[%c16, %c0_12] : memref<120x144xf32, #tpu.memory_space<vmem>>, vector<32x144xf32>
    %c48 = arith.constant 48 : index
    %c0_13 = arith.constant 0 : index
    %11 = vector.load %arg2[%c48, %c0_13] : memref<120x144xf32, #tpu.memory_space<vmem>>, vector<64x32xf32>
    %c112 = arith.constant 112 : index
    %c0_14 = arith.constant 0 : index
    %12 = vector.load %arg2[%c112, %c0_14] : memref<120x144xf32, #tpu.memory_space<vmem>>, vector<8x64xf32>
    %c0_15 = arith.constant 0 : index
    %c0_16 = arith.constant 0 : index
    %13 = vector.load %arg3[%c0_15, %c0_16] : memref<120x1xf32, #tpu.memory_space<vmem>>, vector<16x1xf32>
    %c16_17 = arith.constant 16 : index
    %c0_18 = arith.constant 0 : index
    %14 = vector.load %arg3[%c16_17, %c0_18] : memref<120x1xf32, #tpu.memory_space<vmem>>, vector<32x1xf32>
    %c48_19 = arith.constant 48 : index
    %c0_20 = arith.constant 0 : index
    %15 = vector.load %arg3[%c48_19, %c0_20] : memref<120x1xf32, #tpu.memory_space<vmem>>, vector<64x1xf32>
    %c112_21 = arith.constant 112 : index
    %c0_22 = arith.constant 0 : index
    %16 = vector.load %arg3[%c112_21, %c0_22] : memref<120x1xf32, #tpu.memory_space<vmem>>, vector<8x1xf32>
    %c17_i32 = arith.constant 17 : i32
    %17 = tpu.dynamic_rotate %0 by %c17_i32 dim 1 : vector<16x512xf32>, i32 -> vector<16x512xf32>
    %18 = vector.broadcast %1 : vector<1x512xf32> to vector<16x512xf32>
    %19 = arith.mulf %17, %18 : vector<16x512xf32>
    %c16_i32 = arith.constant 16 : i32
    %20 = tpu.dynamic_rotate %0 by %c16_i32 dim 1 : vector<16x512xf32>, i32 -> vector<16x512xf32>
    %21 = vector.broadcast %2 : vector<1x512xf32> to vector<16x512xf32>
    %22 = arith.mulf %20, %21 : vector<16x512xf32>
    %c15_i32 = arith.constant 15 : i32
    %23 = tpu.dynamic_rotate %0 by %c15_i32 dim 1 : vector<16x512xf32>, i32 -> vector<16x512xf32>
    %24 = vector.broadcast %3 : vector<1x512xf32> to vector<16x512xf32>
    %25 = arith.mulf %23, %24 : vector<16x512xf32>
    %c1_i32 = arith.constant 1 : i32
    %26 = tpu.dynamic_rotate %0 by %c1_i32 dim 1 : vector<16x512xf32>, i32 -> vector<16x512xf32>
    %27 = vector.broadcast %4 : vector<1x512xf32> to vector<16x512xf32>
    %28 = arith.mulf %26, %27 : vector<16x512xf32>
    %c511_i32 = arith.constant 511 : i32
    %29 = tpu.dynamic_rotate %0 by %c511_i32 dim 1 : vector<16x512xf32>, i32 -> vector<16x512xf32>
    %30 = vector.broadcast %5 : vector<1x512xf32> to vector<16x512xf32>
    %31 = arith.mulf %29, %30 : vector<16x512xf32>
    %c497_i32 = arith.constant 497 : i32
    %32 = tpu.dynamic_rotate %0 by %c497_i32 dim 1 : vector<16x512xf32>, i32 -> vector<16x512xf32>
    %33 = vector.broadcast %6 : vector<1x512xf32> to vector<16x512xf32>
    %34 = arith.mulf %32, %33 : vector<16x512xf32>
    %c496_i32 = arith.constant 496 : i32
    %35 = tpu.dynamic_rotate %0 by %c496_i32 dim 1 : vector<16x512xf32>, i32 -> vector<16x512xf32>
    %36 = vector.broadcast %7 : vector<1x512xf32> to vector<16x512xf32>
    %37 = arith.mulf %35, %36 : vector<16x512xf32>
    %c495_i32 = arith.constant 495 : i32
    %38 = tpu.dynamic_rotate %0 by %c495_i32 dim 1 : vector<16x512xf32>, i32 -> vector<16x512xf32>
    %39 = vector.broadcast %8 : vector<1x512xf32> to vector<16x512xf32>
    %40 = arith.mulf %38, %39 : vector<16x512xf32>
    %41 = tpu.concatenate %19, %22, %25, %28, %0, %31, %34, %37, %40 in 0 : vector<16x512xf32>, vector<16x512xf32>, vector<16x512xf32>, vector<16x512xf32>, vector<16x512xf32>, vector<16x512xf32>, vector<16x512xf32>, vector<16x512xf32>, vector<16x512xf32> -> vector<144x512xf32>
    %cst = arith.constant dense<0.000000e+00> : vector<16x512xf32>
    %42 = tpu.matmul %9, %41, %cst {dimension_numbers = #tpu.dot_dimension_numbers<[1], [0], [0], [1], [0, 0, 1, 1], [], []>} : vector<16x144xf32>, vector<144x512xf32>, vector<16x512xf32> -> vector<16x512xf32>
    %43 = vector.broadcast %13 : vector<16x1xf32> to vector<16x512xf32>
    %44 = arith.addf %42, %43 : vector<16x512xf32>
    %cst_23 = arith.constant 0.000000e+00 : f32
    %45 = vector.broadcast %cst_23 : f32 to vector<16x512xf32>
    %46 = arith.maximumf %44, %45 : vector<16x512xf32>
    %c17_i32_24 = arith.constant 17 : i32
    %47 = tpu.dynamic_rotate %46 by %c17_i32_24 dim 1 : vector<16x512xf32>, i32 -> vector<16x512xf32>
    %48 = vector.broadcast %1 : vector<1x512xf32> to vector<16x512xf32>
    %49 = arith.mulf %47, %48 : vector<16x512xf32>
    %c16_i32_25 = arith.constant 16 : i32
    %50 = tpu.dynamic_rotate %46 by %c16_i32_25 dim 1 : vector<16x512xf32>, i32 -> vector<16x512xf32>
    %51 = vector.broadcast %2 : vector<1x512xf32> to vector<16x512xf32>
    %52 = arith.mulf %50, %51 : vector<16x512xf32>
    %c15_i32_26 = arith.constant 15 : i32
    %53 = tpu.dynamic_rotate %46 by %c15_i32_26 dim 1 : vector<16x512xf32>, i32 -> vector<16x512xf32>
    %54 = vector.broadcast %3 : vector<1x512xf32> to vector<16x512xf32>
    %55 = arith.mulf %53, %54 : vector<16x512xf32>
    %c1_i32_27 = arith.constant 1 : i32
    %56 = tpu.dynamic_rotate %46 by %c1_i32_27 dim 1 : vector<16x512xf32>, i32 -> vector<16x512xf32>
    %57 = vector.broadcast %4 : vector<1x512xf32> to vector<16x512xf32>
    %58 = arith.mulf %56, %57 : vector<16x512xf32>
    %c511_i32_28 = arith.constant 511 : i32
    %59 = tpu.dynamic_rotate %46 by %c511_i32_28 dim 1 : vector<16x512xf32>, i32 -> vector<16x512xf32>
    %60 = vector.broadcast %5 : vector<1x512xf32> to vector<16x512xf32>
    %61 = arith.mulf %59, %60 : vector<16x512xf32>
    %c497_i32_29 = arith.constant 497 : i32
    %62 = tpu.dynamic_rotate %46 by %c497_i32_29 dim 1 : vector<16x512xf32>, i32 -> vector<16x512xf32>
    %63 = vector.broadcast %6 : vector<1x512xf32> to vector<16x512xf32>
    %64 = arith.mulf %62, %63 : vector<16x512xf32>
    %c496_i32_30 = arith.constant 496 : i32
    %65 = tpu.dynamic_rotate %46 by %c496_i32_30 dim 1 : vector<16x512xf32>, i32 -> vector<16x512xf32>
    %66 = vector.broadcast %7 : vector<1x512xf32> to vector<16x512xf32>
    %67 = arith.mulf %65, %66 : vector<16x512xf32>
    %c495_i32_31 = arith.constant 495 : i32
    %68 = tpu.dynamic_rotate %46 by %c495_i32_31 dim 1 : vector<16x512xf32>, i32 -> vector<16x512xf32>
    %69 = vector.broadcast %8 : vector<1x512xf32> to vector<16x512xf32>
    %70 = arith.mulf %68, %69 : vector<16x512xf32>
    %71 = tpu.concatenate %49, %52, %55, %58, %46, %61, %64, %67, %70 in 0 : vector<16x512xf32>, vector<16x512xf32>, vector<16x512xf32>, vector<16x512xf32>, vector<16x512xf32>, vector<16x512xf32>, vector<16x512xf32>, vector<16x512xf32>, vector<16x512xf32> -> vector<144x512xf32>
    %cst_32 = arith.constant dense<0.000000e+00> : vector<32x512xf32>
    %72 = tpu.matmul %10, %71, %cst_32 {dimension_numbers = #tpu.dot_dimension_numbers<[1], [0], [0], [1], [0, 0, 1, 1], [], []>} : vector<32x144xf32>, vector<144x512xf32>, vector<32x512xf32> -> vector<32x512xf32>
    %73 = vector.broadcast %14 : vector<32x1xf32> to vector<32x512xf32>
    %74 = arith.addf %72, %73 : vector<32x512xf32>
    %cst_33 = arith.constant 0.000000e+00 : f32
    %75 = vector.broadcast %cst_33 : f32 to vector<32x512xf32>
    %76 = arith.maximumf %74, %75 : vector<32x512xf32>
    %cst_34 = arith.constant dense<0.000000e+00> : vector<64x512xf32>
    %77 = tpu.matmul %11, %76, %cst_34 {dimension_numbers = #tpu.dot_dimension_numbers<[1], [0], [0], [1], [0, 0, 1, 1], [], []>} : vector<64x32xf32>, vector<32x512xf32>, vector<64x512xf32> -> vector<64x512xf32>
    %78 = vector.broadcast %15 : vector<64x1xf32> to vector<64x512xf32>
    %79 = arith.addf %77, %78 : vector<64x512xf32>
    %cst_35 = arith.constant 0.000000e+00 : f32
    %80 = vector.broadcast %cst_35 : f32 to vector<64x512xf32>
    %81 = arith.maximumf %79, %80 : vector<64x512xf32>
    %cst_36 = arith.constant dense<0.000000e+00> : vector<8x512xf32>
    %82 = tpu.matmul %12, %81, %cst_36 {dimension_numbers = #tpu.dot_dimension_numbers<[1], [0], [0], [1], [0, 0, 1, 1], [], []>} : vector<8x64xf32>, vector<64x512xf32>, vector<8x512xf32> -> vector<8x512xf32>
    %83 = vector.broadcast %16 : vector<8x1xf32> to vector<8x512xf32>
    %84 = arith.addf %82, %83 : vector<8x512xf32>
    %c0_37 = arith.constant 0 : index
    %c0_38 = arith.constant 0 : index
    %85 = vector.load %arg5[%c0_37, %c0_38] : memref<8x512xf32, #tpu.memory_space<vmem>>, vector<8x512xf32>
    tpu.vector_store %arg5[%c0_37, %c0_38], %84 {strides = array<i32>} : memref<8x512xf32, #tpu.memory_space<vmem>>, vector<8x512xf32>,
    return
  }
  func.func @transform_0(%arg0: i32) -> (i32, i32) {
    %c0_i32 = arith.constant 0 : i32
    %c0_i32_0 = arith.constant 0 : i32
    return %c0_i32, %arg0 : i32, i32
  }
  func.func @transform_1(%arg0: i32) -> (i32, i32) {
    %c0_i32 = arith.constant 0 : i32
    %c0_i32_0 = arith.constant 0 : i32
    %c0_i32_1 = arith.constant 0 : i32
    return %c0_i32, %c0_i32_0 : i32, i32
  }
  func.func @transform_2(%arg0: i32) -> (i32, i32) {
    %c0_i32 = arith.constant 0 : i32
    %c0_i32_0 = arith.constant 0 : i32
    %c0_i32_1 = arith.constant 0 : i32
    return %c0_i32, %c0_i32_0 : i32, i32
  }
  func.func @transform_3(%arg0: i32) -> (i32, i32) {
    %c0_i32 = arith.constant 0 : i32
    %c0_i32_0 = arith.constant 0 : i32
    %c0_i32_1 = arith.constant 0 : i32
    return %c0_i32, %c0_i32_0 : i32, i32
  }
  func.func @transform_4(%arg0: i32) -> (i32, i32) {
    %c0_i32 = arith.constant 0 : i32
    %c0_i32_0 = arith.constant 0 : i32
    return %c0_i32, %arg0 : i32, i32
  }
}

</mosaic_0001>

<llo_original>
// kernel: fwd.1
$region0: #{fwd.1}
  #allocation0 [shape = 'u32[]', space=smem, size = 0x4, offset = 0x4, fixed_abs, tag = 'smem constant byte address 0x4 - core index']
  #allocation1 [shape = 'u32[144,128]{1,0:T(1,128)}', space=vmem, size = 0x12000, scoped, tag = 'internal scratch']
  %s0 = inlined_call_operand.vmem [shape: f32[16,512], index: 0, kind: input, shape index: {}]
  %s1 = inlined_call_operand.vmem [shape: f32[120,144], index: 1, kind: input, shape index: {}]
  %s2 = inlined_call_operand.vmem [shape: f32[120,1], index: 2, kind: input, shape index: {}]
  %s3 = inlined_call_operand.vmem [shape: f32[9,512], index: 3, kind: input, shape index: {}]
  %s4 = inlined_call_operand.vmem [shape: f32[8,512], index: 4, kind: output, shape index: {}]
  %s5 = sld [smem:[#allocation0]]
  $region26: #{fwd.1} parent=0
    _
  %s7 = ssub.s32 1, %s5
  %s8 = scalar_select 0, %s7, %s5
  // Predicated region
  $region2: #{fwd.1} parent=0 // pred_check
    _
  $region3: #{fwd.1} parent=0 // pred_check_branch
    %10 = sbr.rel (0) target = $region5
  $region4: #{fwd.1} parent=0 // pred_region
    _
  $region5: #{fwd.1} parent=0 // pred_fallthru
    _
  // Predicated region
  $region6: #{fwd.1} parent=0 // pred_check
    _
  $region7: #{fwd.1} parent=0 // pred_check_branch
    %12 = sbr.rel (0) target = $region9
  $region8: #{fwd.1} parent=0 // pred_region
    _
  $region9: #{fwd.1} parent=0 // pred_fallthru
    _
  // Predicated region
  $region10: #{fwd.1} parent=0 // pred_check
    _
  $region11: #{fwd.1} parent=0 // pred_check_branch
    %14 = sbr.rel (0) target = $region13
  $region12: #{fwd.1} parent=0 // pred_region
    _
  $region13: #{fwd.1} parent=0 // pred_fallthru
    _
  // Predicated region
  $region14: #{fwd.1} parent=0 // pred_check
    _
  $region15: #{fwd.1} parent=0 // pred_check_branch
    %16 = sbr.rel (0) target = $region17
  $region16: #{fwd.1} parent=0 // pred_region
    _
  $region17: #{fwd.1} parent=0 // pred_fallthru
    _
  %v17 = vld [vmem:[%s0] sm:$0xff]
  %v18 = vld [vmem:[%s0 + $0x8] sm:$0xff]
  %v19 = vld [vmem:[%s0 + $0x10] sm:$0xff]
  %v20 = vld [vmem:[%s0 + $0x18] sm:$0xff]
  %v21 = vld [vmem:[%s0 + $0x20] sm:$0xff]
  %v22 = vld [vmem:[%s0 + $0x28] sm:$0xff]
  %v23 = vld [vmem:[%s0 + $0x30] sm:$0xff]
  %v24 = vld [vmem:[%s0 + $0x38] sm:$0xff]
  %v25 = vld [vmem:[%s3] ss:$8 sm:$0xf]
  %s26 = scalar_lea.vmem %s3, 1
  %v27 = vld [vmem:[%s26] ss:$8 sm:$0xf]
  %s28 = scalar_lea.vmem %s3, 2
  %v29 = vld [vmem:[%s28] ss:$8 sm:$0xf]
  %s30 = scalar_lea.vmem %s3, 3
  %v31 = vld [vmem:[%s30] ss:$8 sm:$0xf]
  %s32 = scalar_lea.vmem %s3, 5
  %v33 = vld [vmem:[%s32] ss:$8 sm:$0xf]
  %s34 = scalar_lea.vmem %s3, 6
  %v35 = vld [vmem:[%s34] ss:$8 sm:$0xf]
  %s36 = scalar_lea.vmem %s3, 7
  %v37 = vld [vmem:[%s36] ss:$8 sm:$0xf]
  %s38 = scalar_lea.vmem %s3, 32
  %v39 = vld [vmem:[%s38] ss:$8 sm:$0xf]
  %v40 = vld [vmem:[%s1] sm:$0xff]
  %v41 = vld [vmem:[%s1 + $0x8] sm:$0xff]
  %v42 = vld [vmem:[%s1 + $0x10] sm:$0xff]
  %v43 = vld [vmem:[%s1 + $0x18] sm:$0xff]
  %v44 = vld [vmem:[%s1 + $0x20] sm:$0xff]
  %v45 = vld [vmem:[%s1 + $0x28] sm:$0xff]
  %v46 = vld [vmem:[%s1 + $0x30] sm:$0xff]
  %v47 = vld [vmem:[%s1 + $0x38] sm:$0xff]
  %v48 = vld [vmem:[%s1 + $0x40] sm:$0xff]
  %v49 = vld [vmem:[%s1 + $0x48] sm:$0xff]
  %v50 = vld [vmem:[%s1 + $0x50] sm:$0xff]
  %v51 = vld [vmem:[%s1 + $0x58] sm:$0xff]
  %v52 = vld [vmem:[%s1 + $0x60] sm:$0xff]
  %v53 = vld [vmem:[%s1 + $0x70] sm:$0xff]
  %v54 = vld [vmem:[%s1 + $0x80] sm:$0xff]
  %v55 = vld [vmem:[%s1 + $0x90] sm:$0xff]
  %v56 = vld [vmem:[%s1 + $0xa0] sm:$0xff]
  %v57 = vld [vmem:[%s1 + $0xb0] sm:$0xff]
  %v58 = vld [vmem:[%s1 + $0xc0] sm:$0xff]
  %v59 = vld [vmem:[%s1 + $0xd0] sm:$0xff]
  %v60 = vld [vmem:[%s1 + $0xe0] sm:$0xff]
  %v61 = vld [vmem:[%s2] sm:$0xff]
  %v62 = vld [vmem:[%s2 + $0x8] sm:$0xff]
  %v63 = vld [vmem:[%s2 + $0x10] sm:$0xff]
  %v64 = vld [vmem:[%s2 + $0x18] sm:$0xff]
  %v65 = vld [vmem:[%s2 + $0x20] sm:$0xff]
  %v66 = vld [vmem:[%s2 + $0x28] sm:$0xff]
  %v67 = vld [vmem:[%s2 + $0x30] sm:$0xff]
  %v68 = vld [vmem:[%s2 + $0x38] sm:$0xff]
  %v69 = vld [vmem:[%s2 + $0x40] sm:$0xff]
  %v70 = vld [vmem:[%s2 + $0x48] sm:$0xff]
  %v71 = vld [vmem:[%s2 + $0x50] sm:$0xff]
  %v72 = vld [vmem:[%s2 + $0x58] sm:$0xff]
  %v73 = vld [vmem:[%s2 + $0x60] sm:$0xff]
  %v74 = vld [vmem:[%s2 + $0x68] sm:$0xff]
  %v75 = vld [vmem:[%s2 + $0x70] sm:$0xff]
  %76 = vrot.lane.b32.xlu0 %v17, 17
  %v77 = vpop.permute.xlu0 %76
  %78 = vrot.lane.b32.xlu0 %v21, 17
  %v79 = vpop.permute.xlu0 %78
  %80 = vrot.lane.b32.xlu0 %v18, 17
  %v81 = vpop.permute.xlu0 %80
  %82 = vrot.lane.b32.xlu0 %v22, 17
  %v83 = vpop.permute.xlu0 %82
  %84 = vrot.lane.b32.xlu0 %v19, 17
  %v85 = vpop.permute.xlu0 %84
  %86 = vrot.lane.b32.xlu0 %v23, 17
  %v87 = vpop.permute.xlu0 %86
  %88 = vrot.lane.b32.xlu0 %v20, 17
  %v89 = vpop.permute.xlu0 %88
  %90 = vrot.lane.b32.xlu0 %v24, 17
  %v91 = vpop.permute.xlu0 %90
  %v92 = vlaneseq
  %v93 = vand.u32 %v92, 127
  %vm94 = vcmp.lt.s32.totalorder %v93, 17
  %v95 = vsel %vm94, %v85, %v89
  %v96 = vsel %vm94, %v87, %v91
  %v97 = vsel %vm94, %v81, %v85
  %v98 = vsel %vm94, %v83, %v87
  %v99 = vsel %vm94, %v77, %v81
  %v100 = vsel %vm94, %v79, %v83
  %v101 = vsel %vm94, %v89, %v77
  %v102 = vsel %vm94, %v91, %v79
  %v104 = vlaneseq
  %v105 = vshrl.u32 %v104, 7
  %v106 = vsub.s32 0, %v105
  %v107 = vrot.slane %v25, %v106
  %v108 = vlaneseq
  %v109 = vshrl.u32 %v108, 7
  %v110 = vsub.s32 1, %v109
  %v111 = vrot.slane %v25, %v110
  %v112 = vlaneseq
  %v113 = vshrl.u32 %v112, 7
  %v114 = vsub.s32 2, %v113
  %v115 = vrot.slane %v25, %v114
  %v116 = vlaneseq
  %v117 = vshrl.u32 %v116, 7
  %v118 = vsub.s32 3, %v117
  %v119 = vrot.slane %v25, %v118
  %v124 = vmul.f32 %v101, %v107
  %v125 = vmul.f32 %v99, %v111
  %v126 = vmul.f32 %v97, %v115
  %v127 = vmul.f32 %v95, %v119
  %v128 = vmul.f32 %v102, %v107
  %v129 = vmul.f32 %v100, %v111
  %v130 = vmul.f32 %v98, %v115
  %v131 = vmul.f32 %v96, %v119
  %132 = vrot.lane.b32.xlu0 %v17, 16
  %v133 = vpop.permute.xlu0 %132
  %134 = vrot.lane.b32.xlu0 %v21, 16
  %v135 = vpop.permute.xlu0 %134
  %136 = vrot.lane.b32.xlu0 %v18, 16
  %v137 = vpop.permute.xlu0 %136
  %138 = vrot.lane.b32.xlu0 %v22, 16
  %v139 = vpop.permute.xlu0 %138
  %140 = vrot.lane.b32.xlu0 %v19, 16
  %v141 = vpop.permute.xlu0 %140
  %142 = vrot.lane.b32.xlu0 %v23, 16
  %v143 = vpop.permute.xlu0 %142
  %144 = vrot.lane.b32.xlu0 %v20, 16
  %v145 = vpop.permute.xlu0 %144
  %146 = vrot.lane.b32.xlu0 %v24, 16
  %v147 = vpop.permute.xlu0 %146
  %vm148 = vcmp.lt.s32.totalorder %v93, 16
  %v149 = vsel %vm148, %v141, %v145
  %v150 = vsel %vm148, %v143, %v147
  %v151 = vsel %vm148, %v137, %v141
  %v152 = vsel %vm148, %v139, %v143
  %v153 = vsel %vm148, %v133, %v137
  %v154 = vsel %vm148, %v135, %v139
  %v155 = vsel %vm148, %v145, %v133
  %v156 = vsel %vm148, %v147, %v135
  %v158 = vlaneseq
  %v159 = vshrl.u32 %v158, 7
  %v160 = vsub.s32 0, %v159
  %v161 = vrot.slane %v27, %v160
  %v162 = vlaneseq
  %v163 = vshrl.u32 %v162, 7
  %v164 = vsub.s32 1, %v163
  %v165 = vrot.slane %v27, %v164
  %v166 = vlaneseq
  %v167 = vshrl.u32 %v166, 7
  %v168 = vsub.s32 2, %v167
  %v169 = vrot.slane %v27, %v168
  %v170 = vlaneseq
  %v171 = vshrl.u32 %v170, 7
  %v172 = vsub.s32 3, %v171
  %v173 = vrot.slane %v27, %v172
  %v178 = vmul.f32 %v155, %v161
  %v179 = vmul.f32 %v153, %v165
  %v180 = vmul.f32 %v151, %v169
  %v181 = vmul.f32 %v149, %v173
  %v182 = vmul.f32 %v156, %v161
  %v183 = vmul.f32 %v154, %v165
  %v184 = vmul.f32 %v152, %v169
  %v185 = vmul.f32 %v150, %v173
  %186 = vrot.lane.b32.xlu0 %v17, 15
  %v187 = vpop.permute.xlu0 %186
  %188 = vrot.lane.b32.xlu0 %v21, 15
  %v189 = vpop.permute.xlu0 %188
  %190 = vrot.lane.b32.xlu0 %v18, 15
  %v191 = vpop.permute.xlu0 %190
  %192 = vrot.lane.b32.xlu0 %v22, 15
  %v193 = vpop.permute.xlu0 %192
  %194 = vrot.lane.b32.xlu0 %v19, 15
  %v195 = vpop.permute.xlu0 %194
  %196 = vrot.lane.b32.xlu0 %v23, 15
  %v197 = vpop.permute.xlu0 %196
  %198 = vrot.lane.b32.xlu0 %v20, 15
  %v199 = vpop.permute.xlu0 %198
  %200 = vrot.lane.b32.xlu0 %v24, 15
  %v201 = vpop.permute.xlu0 %200
  %vm202 = vcmp.lt.s32.totalorder %v93, 15
  %v203 = vsel %vm202, %v195, %v199
  %v204 = vsel %vm202, %v197, %v201
  %v205 = vsel %vm202, %v191, %v195
  %v206 = vsel %vm202, %v193, %v197
  %v207 = vsel %vm202, %v187, %v191
  %v208 = vsel %vm202, %v189, %v193
  %v209 = vsel %vm202, %v199, %v187
  %v210 = vsel %vm202, %v201, %v189
  %v212 = vlaneseq
  %v213 = vshrl.u32 %v212, 7
  %v214 = vsub.s32 0, %v213
  %v215 = vrot.slane %v29, %v214
  %v216 = vlaneseq
  %v217 = vshrl.u32 %v216, 7
  %v218 = vsub.s32 1, %v217
  %v219 = vrot.slane %v29, %v218
  %v220 = vlaneseq
  %v221 = vshrl.u32 %v220, 7
  %v222 = vsub.s32 2, %v221
  %v223 = vrot.slane %v29, %v222
  %v224 = vlaneseq
  %v225 = vshrl.u32 %v224, 7
  %v226 = vsub.s32 3, %v225
  %v227 = vrot.slane %v29, %v226
  %v232 = vmul.f32 %v209, %v215
  %v233 = vmul.f32 %v207, %v219
  %v234 = vmul.f32 %v205, %v223
  %v235 = vmul.f32 %v203, %v227
  %v236 = vmul.f32 %v210, %v215
  %v237 = vmul.f32 %v208, %v219
  %v238 = vmul.f32 %v206, %v223
  %v239 = vmul.f32 %v204, %v227
  %240 = vrot.lane.b32.xlu0 %v17, 1
  %v241 = vpop.permute.xlu0 %240
  %242 = vrot.lane.b32.xlu0 %v21, 1
  %v243 = vpop.permute.xlu0 %242
  %244 = vrot.lane.b32.xlu0 %v18, 1
  %v245 = vpop.permute.xlu0 %244
  %246 = vrot.lane.b32.xlu0 %v22, 1
  %v247 = vpop.permute.xlu0 %246
  %248 = vrot.lane.b32.xlu0 %v19, 1
  %v249 = vpop.permute.xlu0 %248
  %250 = vrot.lane.b32.xlu0 %v23, 1
  %v251 = vpop.permute.xlu0 %250
  %252 = vrot.lane.b32.xlu0 %v20, 1
  %v253 = vpop.permute.xlu0 %252
  %254 = vrot.lane.b32.xlu0 %v24, 1
  %v255 = vpop.permute.xlu0 %254
  %vm256 = vcmp.lt.s32.totalorder %v93, 1
  %v257 = vsel %vm256, %v249, %v253
  %v258 = vsel %vm256, %v251, %v255
  %v259 = vsel %vm256, %v245, %v249
  %v260 = vsel %vm256, %v247, %v251
  %v261 = vsel %vm256, %v241, %v245
  %v262 = vsel %vm256, %v243, %v247
  %v263 = vsel %vm256, %v253, %v241
  %v264 = vsel %vm256, %v255, %v243
  %v266 = vlaneseq
  %v267 = vshrl.u32 %v266, 7
  %v268 = vsub.s32 0, %v267
  %v269 = vrot.slane %v31, %v268
  %v270 = vlaneseq
  %v271 = vshrl.u32 %v270, 7
  %v272 = vsub.s32 1, %v271
  %v273 = vrot.slane %v31, %v272
  %v274 = vlaneseq
  %v275 = vshrl.u32 %v274, 7
  %v276 = vsub.s32 2, %v275
  %v277 = vrot.slane %v31, %v276
  %v278 = vlaneseq
  %v279 = vshrl.u32 %v278, 7
  %v280 = vsub.s32 3, %v279
  %v281 = vrot.slane %v31, %v280
  %v286 = vmul.f32 %v263, %v269
  %v287 = vmul.f32 %v261, %v273
  %v288 = vmul.f32 %v259, %v277
  %v289 = vmul.f32 %v257, %v281
  %v290 = vmul.f32 %v264, %v269
  %v291 = vmul.f32 %v262, %v273
  %v292 = vmul.f32 %v260, %v277
  %v293 = vmul.f32 %v258, %v281
  %294 = vrot.lane.b32.xlu0 %v17, 127
  %v295 = vpop.permute.xlu0 %294
  %296 = vrot.lane.b32.xlu0 %v21, 127
  %v297 = vpop.permute.xlu0 %296
  %298 = vrot.lane.b32.xlu0 %v18, 127
  %v299 = vpop.permute.xlu0 %298
  %300 = vrot.lane.b32.xlu0 %v22, 127
  %v301 = vpop.permute.xlu0 %300
  %302 = vrot.lane.b32.xlu0 %v19, 127
  %v303 = vpop.permute.xlu0 %302
  %304 = vrot.lane.b32.xlu0 %v23, 127
  %v305 = vpop.permute.xlu0 %304
  %306 = vrot.lane.b32.xlu0 %v20, 127
  %v307 = vpop.permute.xlu0 %306
  %308 = vrot.lane.b32.xlu0 %v24, 127
  %v309 = vpop.permute.xlu0 %308
  %vm310 = vcmp.lt.s32.totalorder %v93, 127
  %v311 = vsel %vm310, %v303, %v307
  %v312 = vsel %vm310, %v305, %v309
  %v313 = vsel %vm310, %v299, %v303
  %v314 = vsel %vm310, %v301, %v305
  %v315 = vsel %vm310, %v295, %v299
  %v316 = vsel %vm310, %v297, %v301
  %v317 = vsel %vm310, %v307, %v295
  %v318 = vsel %vm310, %v309, %v297
  %v320 = vlaneseq
  %v321 = vshrl.u32 %v320, 7
  %v322 = vsub.s32 0, %v321
  %v323 = vrot.slane %v33, %v322
  %v324 = vlaneseq
  %v325 = vshrl.u32 %v324, 7
  %v326 = vsub.s32 1, %v325
  %v327 = vrot.slane %v33, %v326
  %v328 = vlaneseq
  %v329 = vshrl.u32 %v328, 7
  %v330 = vsub.s32 2, %v329
  %v331 = vrot.slane %v33, %v330
  %v332 = vlaneseq
  %v333 = vshrl.u32 %v332, 7
  %v334 = vsub.s32 3, %v333
  %v335 = vrot.slane %v33, %v334
  %v340 = vmul.f32 %v315, %v323
  %v341 = vmul.f32 %v313, %v327
  %v342 = vmul.f32 %v311, %v331
  %v343 = vmul.f32 %v317, %v335
  %v344 = vmul.f32 %v316, %v323
  %v345 = vmul.f32 %v314, %v327
  %v346 = vmul.f32 %v312, %v331
  %v347 = vmul.f32 %v318, %v335
  %348 = vrot.lane.b32.xlu0 %v17, 113
  %v349 = vpop.permute.xlu0 %348
  %350 = vrot.lane.b32.xlu0 %v21, 113
  %v351 = vpop.permute.xlu0 %350
  %352 = vrot.lane.b32.xlu0 %v18, 113
  %v353 = vpop.permute.xlu0 %352
  %354 = vrot.lane.b32.xlu0 %v22, 113
  %v355 = vpop.permute.xlu0 %354
  %356 = vrot.lane.b32.xlu0 %v19, 113
  %v357 = vpop.permute.xlu0 %356
  %358 = vrot.lane.b32.xlu0 %v23, 113
  %v359 = vpop.permute.xlu0 %358
  %360 = vrot.lane.b32.xlu0 %v20, 113
  %v361 = vpop.permute.xlu0 %360
  %362 = vrot.lane.b32.xlu0 %v24, 113
  %v363 = vpop.permute.xlu0 %362
  %vm364 = vcmp.lt.s32.totalorder %v93, 113
  %v365 = vsel %vm364, %v357, %v361
  %v366 = vsel %vm364, %v359, %v363
  %v367 = vsel %vm364, %v353, %v357
  %v368 = vsel %vm364, %v355, %v359
  %v369 = vsel %vm364, %v349, %v353
  %v370 = vsel %vm364, %v351, %v355
  %v371 = vsel %vm364, %v361, %v349
  %v372 = vsel %vm364, %v363, %v351
  %v374 = vlaneseq
  %v375 = vshrl.u32 %v374, 7
  %v376 = vsub.s32 0, %v375
  %v377 = vrot.slane %v35, %v376
  %v378 = vlaneseq
  %v379 = vshrl.u32 %v378, 7
  %v380 = vsub.s32 1, %v379
  %v381 = vrot.slane %v35, %v380
  %v382 = vlaneseq
  %v383 = vshrl.u32 %v382, 7
  %v384 = vsub.s32 2, %v383
  %v385 = vrot.slane %v35, %v384
  %v386 = vlaneseq
  %v387 = vshrl.u32 %v386, 7
  %v388 = vsub.s32 3, %v387
  %v389 = vrot.slane %v35, %v388
  %v394 = vmul.f32 %v369, %v377
  %v395 = vmul.f32 %v367, %v381
  %v396 = vmul.f32 %v365, %v385
  %v397 = vmul.f32 %v371, %v389
  %v398 = vmul.f32 %v370, %v377
  %v399 = vmul.f32 %v368, %v381
  %v400 = vmul.f32 %v366, %v385
  %v401 = vmul.f32 %v372, %v389
  %402 = vrot.lane.b32.xlu0 %v17, 112
  %v403 = vpop.permute.xlu0 %402
  %404 = vrot.lane.b32.xlu0 %v21, 112
  %v405 = vpop.permute.xlu0 %404
  %406 = vrot.lane.b32.xlu0 %v18, 112
  %v407 = vpop.permute.xlu0 %406
  %408 = vrot.lane.b32.xlu0 %v22, 112
  %v409 = vpop.permute.xlu0 %408
  %410 = vrot.lane.b32.xlu0 %v19, 112
  %v411 = vpop.permute.xlu0 %410
  %412 = vrot.lane.b32.xlu0 %v23, 112
  %v413 = vpop.permute.xlu0 %412
  %414 = vrot.lane.b32.xlu0 %v20, 112
  %v415 = vpop.permute.xlu0 %414
  %416 = vrot.lane.b32.xlu0 %v24, 112
  %v417 = vpop.permute.xlu0 %416
  %vm418 = vcmp.lt.s32.totalorder %v93, 112
  %v419 = vsel %vm418, %v411, %v415
  %v420 = vsel %vm418, %v413, %v417
  %v421 = vsel %vm418, %v407, %v411
  %v422 = vsel %vm418, %v409, %v413
  %v423 = vsel %vm418, %v403, %v407
  %v424 = vsel %vm418, %v405, %v409
  %v425 = vsel %vm418, %v415, %v403
  %v426 = vsel %vm418, %v417, %v405
  %v428 = vlaneseq
  %v429 = vshrl.u32 %v428, 7
  %v430 = vsub.s32 0, %v429
  %v431 = vrot.slane %v37, %v430
  %v432 = vlaneseq
  %v433 = vshrl.u32 %v432, 7
  %v434 = vsub.s32 1, %v433
  %v435 = vrot.slane %v37, %v434
  %v436 = vlaneseq
  %v437 = vshrl.u32 %v436, 7
  %v438 = vsub.s32 2, %v437
  %v439 = vrot.slane %v37, %v438
  %v440 = vlaneseq
  %v441 = vshrl.u32 %v440, 7
  %v442 = vsub.s32 3, %v441
  %v443 = vrot.slane %v37, %v442
  %v448 = vmul.f32 %v423, %v431
  %v449 = vmul.f32 %v421, %v435
  %v450 = vmul.f32 %v419, %v439
  %v451 = vmul.f32 %v425, %v443
  %v452 = vmul.f32 %v424, %v431
  %v453 = vmul.f32 %v422, %v435
  %v454 = vmul.f32 %v420, %v439
  %v455 = vmul.f32 %v426, %v443
  %456 = vrot.lane.b32.xlu0 %v17, 111
  %v457 = vpop.permute.xlu0 %456
  %458 = vrot.lane.b32.xlu0 %v21, 111
  %v459 = vpop.permute.xlu0 %458
  %460 = vrot.lane.b32.xlu0 %v18, 111
  %v461 = vpop.permute.xlu0 %460
  %462 = vrot.lane.b32.xlu0 %v22, 111
  %v463 = vpop.permute.xlu0 %462
  %464 = vrot.lane.b32.xlu0 %v19, 111
  %v465 = vpop.permute.xlu0 %464
  %466 = vrot.lane.b32.xlu0 %v23, 111
  %v467 = vpop.permute.xlu0 %466
  %468 = vrot.lane.b32.xlu0 %v20, 111
  %v469 = vpop.permute.xlu0 %468
  %470 = vrot.lane.b32.xlu0 %v24, 111
  %v471 = vpop.permute.xlu0 %470
  %vm472 = vcmp.lt.s32.totalorder %v93, 111
  %v473 = vsel %vm472, %v465, %v469
  %v474 = vsel %vm472, %v467, %v471
  %v475 = vsel %vm472, %v461, %v465
  %v476 = vsel %vm472, %v463, %v467
  %v477 = vsel %vm472, %v457, %v461
  %v478 = vsel %vm472, %v459, %v463
  %v479 = vsel %vm472, %v469, %v457
  %v480 = vsel %vm472, %v471, %v459
  %v482 = vlaneseq
  %v483 = vshrl.u32 %v482, 7
  %v484 = vsub.s32 0, %v483
  %v485 = vrot.slane %v39, %v484
  %v486 = vlaneseq
  %v487 = vshrl.u32 %v486, 7
  %v488 = vsub.s32 1, %v487
  %v489 = vrot.slane %v39, %v488
  %v490 = vlaneseq
  %v491 = vshrl.u32 %v490, 7
  %v492 = vsub.s32 2, %v491
  %v493 = vrot.slane %v39, %v492
  %v494 = vlaneseq
  %v495 = vshrl.u32 %v494, 7
  %v496 = vsub.s32 3, %v495
  %v497 = vrot.slane %v39, %v496
  %v502 = vmul.f32 %v477, %v485
  %v503 = vmul.f32 %v475, %v489
  %v504 = vmul.f32 %v473, %v493
  %v505 = vmul.f32 %v479, %v497
  %v506 = vmul.f32 %v478, %v485
  %v507 = vmul.f32 %v476, %v489
  %v508 = vmul.f32 %v474, %v493
  %v509 = vmul.f32 %v480, %v497
  %511 = vset.pattern.permute.xlu0 0
  %512 = vperm.xlu0 %511, %v61
  %v513 = vpop.permute.xlu0 %512
  %516 = vset.pattern.permute.xlu0 0
  %517 = vperm.xlu0 %516, %v62
  %v518 = vpop.permute.xlu0 %517
  %vm520 = vcmask 130048
  %v522 = vsel %vm520, %v41, 0
  %v525 = vsel %vm520, %v43, 0
  %527 = vmatprep.subr.mxu0 %v453
  %528 = vmatpush1.msra.mxu0 %v452
  %529 = vmatprep.subr.mxu0 %v449
  %530 = vmatpush1.msra.mxu0 %v448
  %531 = vmatprep.subr.mxu0 %v399
  %532 = vmatpush1.msra.mxu0 %v398
  %533 = vmatprep.subr.mxu0 %v395
  %534 = vmatpush1.msra.mxu0 %v394
  %535 = vmatprep.subr.mxu0 %v345
  %536 = vmatpush1.msra.mxu0 %v344
  %537 = vmatprep.subr.mxu0 %v341
  %538 = vmatpush1.msra.mxu0 %v340
  %539 = vmatprep.subr.mxu0 %v22
  %540 = vmatpush1.msra.mxu0 %v21
  %541 = vmatprep.subr.mxu0 %v18
  %542 = vmatpush1.msra.mxu0 %v17
  %543 = vmatprep.subr.mxu0 %v291
  %544 = vmatpush1.msra.mxu0 %v290
  %545 = vmatprep.subr.mxu0 %v287
  %546 = vmatpush1.msra.mxu0 %v286
  %547 = vmatprep.subr.mxu0 %v237
  %548 = vmatpush1.msra.mxu0 %v236
  %549 = vmatprep.subr.mxu0 %v233
  %550 = vmatpush1.msra.mxu0 %v232
  %551 = vmatprep.subr.mxu0 %v183
  %552 = vmatpush1.msra.mxu0 %v182
  %553 = vmatprep.subr.mxu0 %v179
  %554 = vmatpush1.msra.mxu0 %v178
  %555 = vmatprep.subr.mxu0 %v129
  %556 = vmatpush1.msra.mxu0 %v128
  %557 = vmatprep.subr.mxu0 %v125
  %558 = vmatpush1.msra.mxu0 %v124
  %559 = vmatprep.subr.mxu0 0.0
  %560 = vmatpush2.msra.mxu0 0.0
  %561 = vmatprep.subr.mxu0 0.0
  %562 = vmatpush2.msra.mxu0 0.0
  %563 = vmatprep.subr.mxu0 0.0
  %564 = vmatpush2.msra.mxu0 0.0
  %565 = vmatprep.subr.mxu0 0.0
  %566 = vmatpush2.msra.mxu0 0.0
  %567 = vmatprep.subr.mxu0 0.0
  %568 = vmatpush2.msra.mxu0 0.0
  %569 = vmatprep.subr.mxu0 0.0
  %570 = vmatpush2.msra.mxu0 0.0
  %571 = vmatprep.subr.mxu0 0.0
  %572 = vmatpush2.msra.mxu0 0.0
  %573 = vmatprep.subr.mxu0 0.0
  %574 = vmatpush2.msra.mxu0 0.0
  %575 = vmatprep.subr.mxu0 0.0
  %576 = vmatpush2.msra.mxu0 0.0
  %577 = vmatprep.subr.mxu0 0.0
  %578 = vmatpush2.msra.mxu0 0.0
  %579 = vmatprep.subr.mxu0 0.0
  %580 = vmatpush2.msra.mxu0 0.0
  %581 = vmatprep.subr.mxu0 0.0
  %582 = vmatpush2.msra.mxu0 0.0
  %583 = vmatprep.subr.mxu0 0.0
  %584 = vmatpush2.msra.mxu0 0.0
  %585 = vmatprep.subr.mxu0 0.0
  %586 = vmatpush2.msra.mxu0 0.0
  %587 = vmatprep.subr.mxu0 %v507
  %588 = vmatpush2.msra.mxu0 %v506
  %589 = vmatprep.subr.mxu0 %v503
  %590 = vmatpush2.msra.mxu0 %v502
  %591 = vmatprep.mubr.f32.mxu0 %v522
  %592 = vmatmul.mubr.f32.gmra.mxu0 %v40
  %v593 = vpop.f32.mrf.mxu0
  %v594 = vadd.f32 %v513, %v593
  %v595 = vpop.f32.mrf.mxu0
  %v596 = vadd.f32 %v513, %v595
  %597 = vmatprep.mubr.f32.mxu0 %v525
  %598 = vmatmul.mubr.f32.gmra.mxu0 %v42
  %v599 = vpop.f32.mrf.mxu0
  %v600 = vadd.f32 %v518, %v599
  %v601 = vpop.f32.mrf.mxu0
  %v602 = vadd.f32 %v518, %v601
  %603 = vdwg.mxu0
  %604 = vmatprep.subr.mxu0 %v455
  %605 = vmatpush1.msra.mxu0 %v454
  %606 = vmatprep.subr.mxu0 %v451
  %607 = vmatpush1.msra.mxu0 %v450
  %608 = vmatprep.subr.mxu0 %v401
  %609 = vmatpush1.msra.mxu0 %v400
  %610 = vmatprep.subr.mxu0 %v397
  %611 = vmatpush1.msra.mxu0 %v396
  %612 = vmatprep.subr.mxu0 %v347
  %613 = vmatpush1.msra.mxu0 %v346
  %614 = vmatprep.subr.mxu0 %v343
  %615 = vmatpush1.msra.mxu0 %v342
  %616 = vmatprep.subr.mxu0 %v24
  %617 = vmatpush1.msra.mxu0 %v23
  %618 = vmatprep.subr.mxu0 %v20
  %619 = vmatpush1.msra.mxu0 %v19
  %620 = vmatprep.subr.mxu0 %v293
  %621 = vmatpush1.msra.mxu0 %v292
  %622 = vmatprep.subr.mxu0 %v289
  %623 = vmatpush1.msra.mxu0 %v288
  %624 = vmatprep.subr.mxu0 %v239
  %625 = vmatpush1.msra.mxu0 %v238
  %626 = vmatprep.subr.mxu0 %v235
  %627 = vmatpush1.msra.mxu0 %v234
  %628 = vmatprep.subr.mxu0 %v185
  %629 = vmatpush1.msra.mxu0 %v184
  %630 = vmatprep.subr.mxu0 %v181
  %631 = vmatpush1.msra.mxu0 %v180
  %632 = vmatprep.subr.mxu0 %v131
  %633 = vmatpush1.msra.mxu0 %v130
  %634 = vmatprep.subr.mxu0 %v127
  %635 = vmatpush1.msra.mxu0 %v126
  %636 = vmatprep.subr.mxu0 0.0
  %637 = vmatpush2.msra.mxu0 0.0
  %638 = vmatprep.subr.mxu0 0.0
  %639 = vmatpush2.msra.mxu0 0.0
  %640 = vmatprep.subr.mxu0 0.0
  %641 = vmatpush2.msra.mxu0 0.0
  %642 = vmatprep.subr.mxu0 0.0
  %643 = vmatpush2.msra.mxu0 0.0
  %644 = vmatprep.subr.mxu0 0.0
  %645 = vmatpush2.msra.mxu0 0.0
  %646 = vmatprep.subr.mxu0 0.0
  %647 = vmatpush2.msra.mxu0 0.0
  %648 = vmatprep.subr.mxu0 0.0
  %649 = vmatpush2.msra.mxu0 0.0
  %650 = vmatprep.subr.mxu0 0.0
  %651 = vmatpush2.msra.mxu0 0.0
  %652 = vmatprep.subr.mxu0 0.0
  %653 = vmatpush2.msra.mxu0 0.0
  %654 = vmatprep.subr.mxu0 0.0
  %655 = vmatpush2.msra.mxu0 0.0
  %656 = vmatprep.subr.mxu0 0.0
  %657 = vmatpush2.msra.mxu0 0.0
  %658 = vmatprep.subr.mxu0 0.0
  %659 = vmatpush2.msra.mxu0 0.0
  %660 = vmatprep.subr.mxu0 0.0
  %661 = vmatpush2.msra.mxu0 0.0
  %662 = vmatprep.subr.mxu0 0.0
  %663 = vmatpush2.msra.mxu0 0.0
  %664 = vmatprep.subr.mxu0 %v509
  %665 = vmatpush2.msra.mxu0 %v508
  %666 = vmatprep.subr.mxu0 %v505
  %667 = vmatpush2.msra.mxu0 %v504
  %668 = vmatprep.mubr.f32.mxu0 %v522
  %669 = vmatmul.mubr.f32.gmra.mxu0 %v40
  %v670 = vpop.f32.mrf.mxu0
  %v671 = vadd.f32 %v513, %v670
  %v672 = vpop.f32.mrf.mxu0
  %v673 = vadd.f32 %v513, %v672
  %674 = vmatprep.mubr.f32.mxu0 %v525
  %675 = vmatmul.mubr.f32.gmra.mxu0 %v42
  %v676 = vpop.f32.mrf.mxu0
  %v677 = vadd.f32 %v518, %v676
  %v678 = vpop.f32.mrf.mxu0
  %v679 = vadd.f32 %v518, %v678
  %680 = vdwg.mxu0
  %v681 = vmax.f32 %v594, 0.0
  %v682 = vmax.f32 %v596, 0.0
  %v683 = vmax.f32 %v671, 0.0
  %v684 = vmax.f32 %v673, 0.0
  %v685 = vmax.f32 %v600, 0.0
  %v686 = vmax.f32 %v602, 0.0
  %v687 = vmax.f32 %v677, 0.0
  %v688 = vmax.f32 %v679, 0.0
  %689 = vrot.lane.b32.xlu0 %v681, 17
  %v690 = vpop.permute.xlu0 %689
  %691 = vrot.lane.b32.xlu0 %v685, 17
  %v692 = vpop.permute.xlu0 %691
  %693 = vrot.lane.b32.xlu0 %v682, 17
  %v694 = vpop.permute.xlu0 %693
  %695 = vrot.lane.b32.xlu0 %v686, 17
  %v696 = vpop.permute.xlu0 %695
  %697 = vrot.lane.b32.xlu0 %v683, 17
  %v698 = vpop.permute.xlu0 %697
  %699 = vrot.lane.b32.xlu0 %v687, 17
  %v700 = vpop.permute.xlu0 %699
  %701 = vrot.lane.b32.xlu0 %v684, 17
  %v702 = vpop.permute.xlu0 %701
  %703 = vrot.lane.b32.xlu0 %v688, 17
  %v704 = vpop.permute.xlu0 %703
  %v705 = vsel %vm94, %v698, %v702
  %v706 = vsel %vm94, %v700, %v704
  %v707 = vsel %vm94, %v694, %v698
  %v708 = vsel %vm94, %v696, %v700
  %v709 = vsel %vm94, %v690, %v694
  %v710 = vsel %vm94, %v692, %v696
  %v711 = vsel %vm94, %v702, %v690
  %v712 = vsel %vm94, %v704, %v692
  %v713 = vmul.f32 %v711, %v107
  %v714 = vmul.f32 %v709, %v111
  %v715 = vmul.f32 %v707, %v115
  %v716 = vmul.f32 %v705, %v119
  %v717 = vmul.f32 %v712, %v107
  %v718 = vmul.f32 %v710, %v111
  %v719 = vmul.f32 %v708, %v115
  %v720 = vmul.f32 %v706, %v119
  %721 = vrot.lane.b32.xlu0 %v681, 16
  %v722 = vpop.permute.xlu0 %721
  %723 = vrot.lane.b32.xlu0 %v685, 16
  %v724 = vpop.permute.xlu0 %723
  %725 = vrot.lane.b32.xlu0 %v682, 16
  %v726 = vpop.permute.xlu0 %725
  %727 = vrot.lane.b32.xlu0 %v686, 16
  %v728 = vpop.permute.xlu0 %727
  %729 = vrot.lane.b32.xlu0 %v683, 16
  %v730 = vpop.permute.xlu0 %729
  %731 = vrot.lane.b32.xlu0 %v687, 16
  %v732 = vpop.permute.xlu0 %731
  %733 = vrot.lane.b32.xlu0 %v684, 16
  %v734 = vpop.permute.xlu0 %733
  %735 = vrot.lane.b32.xlu0 %v688, 16
  %v736 = vpop.permute.xlu0 %735
  %v737 = vsel %vm148, %v730, %v734
  %v738 = vsel %vm148, %v732, %v736
  %v739 = vsel %vm148, %v726, %v730
  %v740 = vsel %vm148, %v728, %v732
  %v741 = vsel %vm148, %v722, %v726
  %v742 = vsel %vm148, %v724, %v728
  %v743 = vsel %vm148, %v734, %v722
  %v744 = vsel %vm148, %v736, %v724
  %v745 = vmul.f32 %v743, %v161
  %v746 = vmul.f32 %v741, %v165
  %v747 = vmul.f32 %v739, %v169
  %v748 = vmul.f32 %v737, %v173
  %v749 = vmul.f32 %v744, %v161
  %v750 = vmul.f32 %v742, %v165
  %v751 = vmul.f32 %v740, %v169
  %v752 = vmul.f32 %v738, %v173
  %753 = vrot.lane.b32.xlu0 %v681, 15
  %v754 = vpop.permute.xlu0 %753
  %755 = vrot.lane.b32.xlu0 %v685, 15
  %v756 = vpop.permute.xlu0 %755
  %757 = vrot.lane.b32.xlu0 %v682, 15
  %v758 = vpop.permute.xlu0 %757
  %759 = vrot.lane.b32.xlu0 %v686, 15
  %v760 = vpop.permute.xlu0 %759
  %761 = vrot.lane.b32.xlu0 %v683, 15
  %v762 = vpop.permute.xlu0 %761
  %763 = vrot.lane.b32.xlu0 %v687, 15
  %v764 = vpop.permute.xlu0 %763
  %765 = vrot.lane.b32.xlu0 %v684, 15
  %v766 = vpop.permute.xlu0 %765
  %767 = vrot.lane.b32.xlu0 %v688, 15
  %v768 = vpop.permute.xlu0 %767
  %v769 = vsel %vm202, %v762, %v766
  %v770 = vsel %vm202, %v764, %v768
  %v771 = vsel %vm202, %v758, %v762
  %v772 = vsel %vm202, %v760, %v764
  %v773 = vsel %vm202, %v754, %v758
  %v774 = vsel %vm202, %v756, %v760
  %v775 = vsel %vm202, %v766, %v754
  %v776 = vsel %vm202, %v768, %v756
  %v777 = vmul.f32 %v775, %v215
  %v778 = vmul.f32 %v773, %v219
  %v779 = vmul.f32 %v771, %v223
  %v780 = vmul.f32 %v769, %v227
  %v781 = vmul.f32 %v776, %v215
  %v782 = vmul.f32 %v774, %v219
  %v783 = vmul.f32 %v772, %v223
  %v784 = vmul.f32 %v770, %v227
  %785 = vrot.lane.b32.xlu0 %v681, 1
  %v786 = vpop.permute.xlu0 %785
  %787 = vrot.lane.b32.xlu0 %v685, 1
  %v788 = vpop.permute.xlu0 %787
  %789 = vrot.lane.b32.xlu0 %v682, 1
  %v790 = vpop.permute.xlu0 %789
  %791 = vrot.lane.b32.xlu0 %v686, 1
  %v792 = vpop.permute.xlu0 %791
  %793 = vrot.lane.b32.xlu0 %v683, 1
  %v794 = vpop.permute.xlu0 %793
  %795 = vrot.lane.b32.xlu0 %v687, 1
  %v796 = vpop.permute.xlu0 %795
  %797 = vrot.lane.b32.xlu0 %v684, 1
  %v798 = vpop.permute.xlu0 %797
  %799 = vrot.lane.b32.xlu0 %v688, 1
  %v800 = vpop.permute.xlu0 %799
  %v801 = vsel %vm256, %v794, %v798
  %v802 = vsel %vm256, %v796, %v800
  %v803 = vsel %vm256, %v790, %v794
  %v804 = vsel %vm256, %v792, %v796
  %v805 = vsel %vm256, %v786, %v790
  %v806 = vsel %vm256, %v788, %v792
  %v807 = vsel %vm256, %v798, %v786
  %v808 = vsel %vm256, %v800, %v788
  %v809 = vmul.f32 %v807, %v269
  %v810 = vmul.f32 %v805, %v273
  %v811 = vmul.f32 %v803, %v277
  %v812 = vmul.f32 %v801, %v281
  %v813 = vmul.f32 %v808, %v269
  %v814 = vmul.f32 %v806, %v273
  %v815 = vmul.f32 %v804, %v277
  %v816 = vmul.f32 %v802, %v281
  %817 = vrot.lane.b32.xlu0 %v681, 127
  %v818 = vpop.permute.xlu0 %817
  %819 = vrot.lane.b32.xlu0 %v685, 127
  %v820 = vpop.permute.xlu0 %819
  %821 = vrot.lane.b32.xlu0 %v682, 127
  %v822 = vpop.permute.xlu0 %821
  %823 = vrot.lane.b32.xlu0 %v686, 127
  %v824 = vpop.permute.xlu0 %823
  %825 = vrot.lane.b32.xlu0 %v683, 127
  %v826 = vpop.permute.xlu0 %825
  %827 = vrot.lane.b32.xlu0 %v687, 127
  %v828 = vpop.permute.xlu0 %827
  %829 = vrot.lane.b32.xlu0 %v684, 127
  %v830 = vpop.permute.xlu0 %829
  %831 = vrot.lane.b32.xlu0 %v688, 127
  %v832 = vpop.permute.xlu0 %831
  %v833 = vsel %vm310, %v826, %v830
  %v834 = vsel %vm310, %v828, %v832
  %v835 = vsel %vm310, %v822, %v826
  %v836 = vsel %vm310, %v824, %v828
  %v837 = vsel %vm310, %v818, %v822
  %v838 = vsel %vm310, %v820, %v824
  %v839 = vsel %vm310, %v830, %v818
  %v840 = vsel %vm310, %v832, %v820
  %v841 = vmul.f32 %v837, %v323
  %v842 = vmul.f32 %v835, %v327
  %v843 = vmul.f32 %v833, %v331
  %v844 = vmul.f32 %v839, %v335
  %v845 = vmul.f32 %v838, %v323
  %v846 = vmul.f32 %v836, %v327
  %v847 = vmul.f32 %v834, %v331
  %v848 = vmul.f32 %v840, %v335
  %849 = vrot.lane.b32.xlu0 %v681, 113
  %v850 = vpop.permute.xlu0 %849
  %851 = vrot.lane.b32.xlu0 %v685, 113
  %v852 = vpop.permute.xlu0 %851
  %853 = vrot.lane.b32.xlu0 %v682, 113
  %v854 = vpop.permute.xlu0 %853
  %855 = vrot.lane.b32.xlu0 %v686, 113
  %v856 = vpop.permute.xlu0 %855
  %857 = vrot.lane.b32.xlu0 %v683, 113
  %v858 = vpop.permute.xlu0 %857
  %859 = vrot.lane.b32.xlu0 %v687, 113
  %v860 = vpop.permute.xlu0 %859
  %861 = vrot.lane.b32.xlu0 %v684, 113
  %v862 = vpop.permute.xlu0 %861
  %863 = vrot.lane.b32.xlu0 %v688, 113
  %v864 = vpop.permute.xlu0 %863
  %v865 = vsel %vm364, %v858, %v862
  %v866 = vsel %vm364, %v860, %v864
  %v867 = vsel %vm364, %v854, %v858
  %v868 = vsel %vm364, %v856, %v860
  %v869 = vsel %vm364, %v850, %v854
  %v870 = vsel %vm364, %v852, %v856
  %v871 = vsel %vm364, %v862, %v850
  %v872 = vsel %vm364, %v864, %v852
  %v873 = vmul.f32 %v869, %v377
  %v874 = vmul.f32 %v867, %v381
  %v875 = vmul.f32 %v865, %v385
  %v876 = vmul.f32 %v871, %v389
  %v877 = vmul.f32 %v870, %v377
  %v878 = vmul.f32 %v868, %v381
  %v879 = vmul.f32 %v866, %v385
  %v880 = vmul.f32 %v872, %v389
  %881 = vrot.lane.b32.xlu0 %v681, 112
  %v882 = vpop.permute.xlu0 %881
  %883 = vrot.lane.b32.xlu0 %v685, 112
  %v884 = vpop.permute.xlu0 %883
  %885 = vrot.lane.b32.xlu0 %v682, 112
  %v886 = vpop.permute.xlu0 %885
  %887 = vrot.lane.b32.xlu0 %v686, 112
  %v888 = vpop.permute.xlu0 %887
  %889 = vrot.lane.b32.xlu0 %v683, 112
  %v890 = vpop.permute.xlu0 %889
  %891 = vrot.lane.b32.xlu0 %v687, 112
  %v892 = vpop.permute.xlu0 %891
  %893 = vrot.lane.b32.xlu0 %v684, 112
  %v894 = vpop.permute.xlu0 %893
  %895 = vrot.lane.b32.xlu0 %v688, 112
  %v896 = vpop.permute.xlu0 %895
  %v897 = vsel %vm418, %v890, %v894
  %v898 = vsel %vm418, %v892, %v896
  %v899 = vsel %vm418, %v886, %v890
  %v900 = vsel %vm418, %v888, %v892
  %v901 = vsel %vm418, %v882, %v886
  %v902 = vsel %vm418, %v884, %v888
  %v903 = vsel %vm418, %v894, %v882
  %v904 = vsel %vm418, %v896, %v884
  %v905 = vmul.f32 %v901, %v431
  %v906 = vmul.f32 %v899, %v435
  %v907 = vmul.f32 %v897, %v439
  %v908 = vmul.f32 %v903, %v443
  %v909 = vmul.f32 %v902, %v431
  %v910 = vmul.f32 %v900, %v435
  %v911 = vmul.f32 %v898, %v439
  %v912 = vmul.f32 %v904, %v443
  %913 = vrot.lane.b32.xlu0 %v681, 111
  %v914 = vpop.permute.xlu0 %913
  %915 = vrot.lane.b32.xlu0 %v685, 111
  %v916 = vpop.permute.xlu0 %915
  %917 = vrot.lane.b32.xlu0 %v682, 111
  %v918 = vpop.permute.xlu0 %917
  %919 = vrot.lane.b32.xlu0 %v686, 111
  %v920 = vpop.permute.xlu0 %919
  %921 = vrot.lane.b32.xlu0 %v683, 111
  %v922 = vpop.permute.xlu0 %921
  %923 = vrot.lane.b32.xlu0 %v687, 111
  %v924 = vpop.permute.xlu0 %923
  %925 = vrot.lane.b32.xlu0 %v684, 111
  %v926 = vpop.permute.xlu0 %925
  %927 = vrot.lane.b32.xlu0 %v688, 111
  %v928 = vpop.permute.xlu0 %927
  %v929 = vsel %vm472, %v922, %v926
  %v930 = vsel %vm472, %v924, %v928
  %v931 = vsel %vm472, %v918, %v922
  %v932 = vsel %vm472, %v920, %v924
  %v933 = vsel %vm472, %v914, %v918
  %v934 = vsel %vm472, %v916, %v920
  %v935 = vsel %vm472, %v926, %v914
  %v936 = vsel %vm472, %v928, %v916
  %v937 = vmul.f32 %v933, %v485
  %v938 = vmul.f32 %v931, %v489
  %v939 = vmul.f32 %v929, %v493
  %v940 = vmul.f32 %v935, %v497
  %v941 = vmul.f32 %v934, %v485
  %v942 = vmul.f32 %v932, %v489
  %v943 = vmul.f32 %v930, %v493
  %v944 = vmul.f32 %v936, %v497
  %946 = vset.pattern.permute.xlu0 0
  %947 = vperm.xlu0 %946, %v63
  %v948 = vpop.permute.xlu0 %947
  %951 = vset.pattern.permute.xlu0 0
  %952 = vperm.xlu0 %951, %v64
  %v953 = vpop.permute.xlu0 %952
  %956 = vset.pattern.permute.xlu0 0
  %957 = vperm.xlu0 %956, %v65
  %v958 = vpop.permute.xlu0 %957
  %961 = vset.pattern.permute.xlu0 0
  %962 = vperm.xlu0 %961, %v66
  %v963 = vpop.permute.xlu0 %962
  %v966 = vsel %vm520, %v45, 0
  %v969 = vsel %vm520, %v47, 0
  %v972 = vsel %vm520, %v49, 0
  %v975 = vsel %vm520, %v51, 0
  %977 = vmatprep.subr.mxu0 %v910
  %978 = vmatpush1.msra.mxu0 %v909
  %979 = vmatprep.subr.mxu0 %v906
  %980 = vmatpush1.msra.mxu0 %v905
  %981 = vmatprep.subr.mxu0 %v878
  %982 = vmatpush1.msra.mxu0 %v877
  %983 = vmatprep.subr.mxu0 %v874
  %984 = vmatpush1.msra.mxu0 %v873
  %985 = vmatprep.subr.mxu0 %v846
  %986 = vmatpush1.msra.mxu0 %v845
  %987 = vmatprep.subr.mxu0 %v842
  %988 = vmatpush1.msra.mxu0 %v841
  %989 = vmatprep.subr.mxu0 %v686
  %990 = vmatpush1.msra.mxu0 %v685
  %991 = vmatprep.subr.mxu0 %v682
  %992 = vmatpush1.msra.mxu0 %v681
  %993 = vmatprep.subr.mxu0 %v814
  %994 = vmatpush1.msra.mxu0 %v813
  %995 = vmatprep.subr.mxu0 %v810
  %996 = vmatpush1.msra.mxu0 %v809
  %997 = vmatprep.subr.mxu0 %v782
  %998 = vmatpush1.msra.mxu0 %v781
  %999 = vmatprep.subr.mxu0 %v778
  %1000 = vmatpush1.msra.mxu0 %v777
  %1001 = vmatprep.subr.mxu0 %v750
  %1002 = vmatpush1.msra.mxu0 %v749
  %1003 = vmatprep.subr.mxu0 %v746
  %1004 = vmatpush1.msra.mxu0 %v745
  %1005 = vmatprep.subr.mxu0 %v718
  %1006 = vmatpush1.msra.mxu0 %v717
  %1007 = vmatprep.subr.mxu0 %v714
  %1008 = vmatpush1.msra.mxu0 %v713
  %1009 = vmatprep.subr.mxu0 0.0
  %1010 = vmatpush2.msra.mxu0 0.0
  %1011 = vmatprep.subr.mxu0 0.0
  %1012 = vmatpush2.msra.mxu0 0.0
  %1013 = vmatprep.subr.mxu0 0.0
  %1014 = vmatpush2.msra.mxu0 0.0
  %1015 = vmatprep.subr.mxu0 0.0
  %1016 = vmatpush2.msra.mxu0 0.0
  %1017 = vmatprep.subr.mxu0 0.0
  %1018 = vmatpush2.msra.mxu0 0.0
  %1019 = vmatprep.subr.mxu0 0.0
  %1020 = vmatpush2.msra.mxu0 0.0
  %1021 = vmatprep.subr.mxu0 0.0
  %1022 = vmatpush2.msra.mxu0 0.0
  %1023 = vmatprep.subr.mxu0 0.0
  %1024 = vmatpush2.msra.mxu0 0.0
  %1025 = vmatprep.subr.mxu0 0.0
  %1026 = vmatpush2.msra.mxu0 0.0
  %1027 = vmatprep.subr.mxu0 0.0
  %1028 = vmatpush2.msra.mxu0 0.0
  %1029 = vmatprep.subr.mxu0 0.0
  %1030 = vmatpush2.msra.mxu0 0.0
  %1031 = vmatprep.subr.mxu0 0.0
  %1032 = vmatpush2.msra.mxu0 0.0
  %1033 = vmatprep.subr.mxu0 0.0
  %1034 = vmatpush2.msra.mxu0 0.0
  %1035 = vmatprep.subr.mxu0 0.0
  %1036 = vmatpush2.msra.mxu0 0.0
  %1037 = vmatprep.subr.mxu0 %v942
  %1038 = vmatpush2.msra.mxu0 %v941
  %1039 = vmatprep.subr.mxu0 %v938
  %1040 = vmatpush2.msra.mxu0 %v937
  %1041 = vmatprep.mubr.f32.mxu0 %v966
  %1042 = vmatmul.mubr.f32.gmra.mxu0 %v44
  %v1043 = vpop.f32.mrf.mxu0
  %v1044 = vadd.f32 %v948, %v1043
  %v1045 = vpop.f32.mrf.mxu0
  %v1046 = vadd.f32 %v948, %v1045
  %1047 = vmatprep.mubr.f32.mxu0 %v969
  %1048 = vmatmul.mubr.f32.gmra.mxu0 %v46
  %v1049 = vpop.f32.mrf.mxu0
  %v1050 = vadd.f32 %v953, %v1049
  %v1051 = vpop.f32.mrf.mxu0
  %v1052 = vadd.f32 %v953, %v1051
  %1053 = vmatprep.mubr.f32.mxu0 %v972
  %1054 = vmatmul.mubr.f32.gmra.mxu0 %v48
  %v1055 = vpop.f32.mrf.mxu0
  %v1056 = vadd.f32 %v958, %v1055
  %v1057 = vpop.f32.mrf.mxu0
  %v1058 = vadd.f32 %v958, %v1057
  %1059 = vmatprep.mubr.f32.mxu0 %v975
  %1060 = vmatmul.mubr.f32.gmra.mxu0 %v50
  %v1061 = vpop.f32.mrf.mxu0
  %v1062 = vadd.f32 %v963, %v1061
  %v1063 = vpop.f32.mrf.mxu0
  %v1064 = vadd.f32 %v963, %v1063
  %1065 = vdwg.mxu0
  %1066 = vmatprep.subr.mxu0 %v912
  %1067 = vmatpush1.msra.mxu0 %v911
  %1068 = vmatprep.subr.mxu0 %v908
  %1069 = vmatpush1.msra.mxu0 %v907
  %1070 = vmatprep.subr.mxu0 %v880
  %1071 = vmatpush1.msra.mxu0 %v879
  %1072 = vmatprep.subr.mxu0 %v876
  %1073 = vmatpush1.msra.mxu0 %v875
  %1074 = vmatprep.subr.mxu0 %v848
  %1075 = vmatpush1.msra.mxu0 %v847
  %1076 = vmatprep.subr.mxu0 %v844
  %1077 = vmatpush1.msra.mxu0 %v843
  %1078 = vmatprep.subr.mxu0 %v688
  %1079 = vmatpush1.msra.mxu0 %v687
  %1080 = vmatprep.subr.mxu0 %v684
  %1081 = vmatpush1.msra.mxu0 %v683
  %1082 = vmatprep.subr.mxu0 %v816
  %1083 = vmatpush1.msra.mxu0 %v815
  %1084 = vmatprep.subr.mxu0 %v812
  %1085 = vmatpush1.msra.mxu0 %v811
  %1086 = vmatprep.subr.mxu0 %v784
  %1087 = vmatpush1.msra.mxu0 %v783
  %1088 = vmatprep.subr.mxu0 %v780
  %1089 = vmatpush1.msra.mxu0 %v779
  %1090 = vmatprep.subr.mxu0 %v752
  %1091 = vmatpush1.msra.mxu0 %v751
  %1092 = vmatprep.subr.mxu0 %v748
  %1093 = vmatpush1.msra.mxu0 %v747
  %1094 = vmatprep.subr.mxu0 %v720
  %1095 = vmatpush1.msra.mxu0 %v719
  %1096 = vmatprep.subr.mxu0 %v716
  %1097 = vmatpush1.msra.mxu0 %v715
  %1098 = vmatprep.subr.mxu0 0.0
  %1099 = vmatpush2.msra.mxu0 0.0
  %1100 = vmatprep.subr.mxu0 0.0
  %1101 = vmatpush2.msra.mxu0 0.0
  %1102 = vmatprep.subr.mxu0 0.0
  %1103 = vmatpush2.msra.mxu0 0.0
  %1104 = vmatprep.subr.mxu0 0.0
  %1105 = vmatpush2.msra.mxu0 0.0
  %1106 = vmatprep.subr.mxu0 0.0
  %1107 = vmatpush2.msra.mxu0 0.0
  %1108 = vmatprep.subr.mxu0 0.0
  %1109 = vmatpush2.msra.mxu0 0.0
  %1110 = vmatprep.subr.mxu0 0.0
  %1111 = vmatpush2.msra.mxu0 0.0
  %1112 = vmatprep.subr.mxu0 0.0
  %1113 = vmatpush2.msra.mxu0 0.0
  %1114 = vmatprep.subr.mxu0 0.0
  %1115 = vmatpush2.msra.mxu0 0.0
  %1116 = vmatprep.subr.mxu0 0.0
  %1117 = vmatpush2.msra.mxu0 0.0
  %1118 = vmatprep.subr.mxu0 0.0
  %1119 = vmatpush2.msra.mxu0 0.0
  %1120 = vmatprep.subr.mxu0 0.0
  %1121 = vmatpush2.msra.mxu0 0.0
  %1122 = vmatprep.subr.mxu0 0.0
  %1123 = vmatpush2.msra.mxu0 0.0
  %1124 = vmatprep.subr.mxu0 0.0
  %1125 = vmatpush2.msra.mxu0 0.0
  %1126 = vmatprep.subr.mxu0 %v944
  %1127 = vmatpush2.msra.mxu0 %v943
  %1128 = vmatprep.subr.mxu0 %v940
  %1129 = vmatpush2.msra.mxu0 %v939
  %1130 = vmatprep.mubr.f32.mxu0 %v966
  %1131 = vmatmul.mubr.f32.gmra.mxu0 %v44
  %v1132 = vpop.f32.mrf.mxu0
  %v1133 = vadd.f32 %v948, %v1132
  %v1134 = vpop.f32.mrf.mxu0
  %v1135 = vadd.f32 %v948, %v1134
  %1136 = vmatprep.mubr.f32.mxu0 %v969
  %1137 = vmatmul.mubr.f32.gmra.mxu0 %v46
  %v1138 = vpop.f32.mrf.mxu0
  %v1139 = vadd.f32 %v953, %v1138
  %v1140 = vpop.f32.mrf.mxu0
  %v1141 = vadd.f32 %v953, %v1140
  %1142 = vmatprep.mubr.f32.mxu0 %v972
  %1143 = vmatmul.mubr.f32.gmra.mxu0 %v48
  %v1144 = vpop.f32.mrf.mxu0
  %v1145 = vadd.f32 %v958, %v1144
  %v1146 = vpop.f32.mrf.mxu0
  %v1147 = vadd.f32 %v958, %v1146
  %1148 = vmatprep.mubr.f32.mxu0 %v975
  %1149 = vmatmul.mubr.f32.gmra.mxu0 %v50
  %v1150 = vpop.f32.mrf.mxu0
  %v1151 = vadd.f32 %v963, %v1150
  %v1152 = vpop.f32.mrf.mxu0
  %v1153 = vadd.f32 %v963, %v1152
  %1154 = vdwg.mxu0
  %v1155 = vmax.f32 %v1044, 0.0
  %v1156 = vmax.f32 %v1046, 0.0
  %v1157 = vmax.f32 %v1133, 0.0
  %v1158 = vmax.f32 %v1135, 0.0
  %v1159 = vmax.f32 %v1050, 0.0
  %v1160 = vmax.f32 %v1052, 0.0
  %v1161 = vmax.f32 %v1139, 0.0
  %v1162 = vmax.f32 %v1141, 0.0
  %v1163 = vmax.f32 %v1056, 0.0
  %v1164 = vmax.f32 %v1058, 0.0
  %v1165 = vmax.f32 %v1145, 0.0
  %v1166 = vmax.f32 %v1147, 0.0
  %v1167 = vmax.f32 %v1062, 0.0
  %v1168 = vmax.f32 %v1064, 0.0
  %v1169 = vmax.f32 %v1151, 0.0
  %v1170 = vmax.f32 %v1153, 0.0
  %1172 = vset.pattern.permute.xlu0 0
  %1173 = vperm.xlu0 %1172, %v67
  %v1174 = vpop.permute.xlu0 %1173
  %1177 = vset.pattern.permute.xlu0 0
  %1178 = vperm.xlu0 %1177, %v68
  %v1179 = vpop.permute.xlu0 %1178
  %1182 = vset.pattern.permute.xlu0 0
  %1183 = vperm.xlu0 %1182, %v69
  %v1184 = vpop.permute.xlu0 %1183
  %1187 = vset.pattern.permute.xlu0 0
  %1188 = vperm.xlu0 %1187, %v70
  %v1189 = vpop.permute.xlu0 %1188
  %1192 = vset.pattern.permute.xlu0 0
  %1193 = vperm.xlu0 %1192, %v71
  %v1194 = vpop.permute.xlu0 %1193
  %1197 = vset.pattern.permute.xlu0 0
  %1198 = vperm.xlu0 %1197, %v72
  %v1199 = vpop.permute.xlu0 %1198
  %1202 = vset.pattern.permute.xlu0 0
  %1203 = vperm.xlu0 %1202, %v73
  %v1204 = vpop.permute.xlu0 %1203
  %1207 = vset.pattern.permute.xlu0 0
  %1208 = vperm.xlu0 %1207, %v74
  %v1209 = vpop.permute.xlu0 %1208
  %vm1211 = vcmask 261120
  %v1213 = vsel %vm1211, %v52, 0
  %v1216 = vsel %vm1211, %v53, 0
  %v1219 = vsel %vm1211, %v54, 0
  %v1222 = vsel %vm1211, %v55, 0
  %v1225 = vsel %vm1211, %v56, 0
  %v1228 = vsel %vm1211, %v57, 0
  %v1231 = vsel %vm1211, %v58, 0
  %v1234 = vsel %vm1211, %v59, 0
  %1236 = vmatprep.subr.mxu0 0.0
  %1237 = vmatpush1.msra.mxu0 0.0
  %1238 = vmatprep.subr.mxu0 0.0
  %1239 = vmatpush1.msra.mxu0 0.0
  %1240 = vmatprep.subr.mxu0 0.0
  %1241 = vmatpush1.msra.mxu0 0.0
  %1242 = vmatprep.subr.mxu0 0.0
  %1243 = vmatpush1.msra.mxu0 0.0
  %1244 = vmatprep.subr.mxu0 0.0
  %1245 = vmatpush1.msra.mxu0 0.0
  %1246 = vmatprep.subr.mxu0 0.0
  %1247 = vmatpush1.msra.mxu0 0.0
  %1248 = vmatprep.subr.mxu0 0.0
  %1249 = vmatpush1.msra.mxu0 0.0
  %1250 = vmatprep.subr.mxu0 0.0
  %1251 = vmatpush1.msra.mxu0 0.0
  %1252 = vmatprep.subr.mxu0 0.0
  %1253 = vmatpush1.msra.mxu0 0.0
  %1254 = vmatprep.subr.mxu0 0.0
  %1255 = vmatpush1.msra.mxu0 0.0
  %1256 = vmatprep.subr.mxu0 0.0
  %1257 = vmatpush1.msra.mxu0 0.0
  %1258 = vmatprep.subr.mxu0 0.0
  %1259 = vmatpush1.msra.mxu0 0.0
  %1260 = vmatprep.subr.mxu0 %v1168
  %1261 = vmatpush1.msra.mxu0 %v1167
  %1262 = vmatprep.subr.mxu0 %v1164
  %1263 = vmatpush1.msra.mxu0 %v1163
  %1264 = vmatprep.subr.mxu0 %v1160
  %1265 = vmatpush1.msra.mxu0 %v1159
  %1266 = vmatprep.subr.mxu0 %v1156
  %1267 = vmatpush1.msra.mxu0 %v1155
  %1268 = vmatprep.subr.mxu0 0.0
  %1269 = vmatpush2.msra.mxu0 0.0
  %1270 = vmatprep.subr.mxu0 0.0
  %1271 = vmatpush2.msra.mxu0 0.0
  %1272 = vmatprep.subr.mxu0 0.0
  %1273 = vmatpush2.msra.mxu0 0.0
  %1274 = vmatprep.subr.mxu0 0.0
  %1275 = vmatpush2.msra.mxu0 0.0
  %1276 = vmatprep.subr.mxu0 0.0
  %1277 = vmatpush2.msra.mxu0 0.0
  %1278 = vmatprep.subr.mxu0 0.0
  %1279 = vmatpush2.msra.mxu0 0.0
  %1280 = vmatprep.subr.mxu0 0.0
  %1281 = vmatpush2.msra.mxu0 0.0
  %1282 = vmatprep.subr.mxu0 0.0
  %1283 = vmatpush2.msra.mxu0 0.0
  %1284 = vmatprep.subr.mxu0 0.0
  %1285 = vmatpush2.msra.mxu0 0.0
  %1286 = vmatprep.subr.mxu0 0.0
  %1287 = vmatpush2.msra.mxu0 0.0
  %1288 = vmatprep.subr.mxu0 0.0
  %1289 = vmatpush2.msra.mxu0 0.0
  %1290 = vmatprep.subr.mxu0 0.0
  %1291 = vmatpush2.msra.mxu0 0.0
  %1292 = vmatprep.subr.mxu0 0.0
  %1293 = vmatpush2.msra.mxu0 0.0
  %1294 = vmatprep.subr.mxu0 0.0
  %1295 = vmatpush2.msra.mxu0 0.0
  %1296 = vmatprep.subr.mxu0 0.0
  %1297 = vmatpush2.msra.mxu0 0.0
  %1298 = vmatprep.subr.mxu0 0.0
  %1299 = vmatpush2.msra.mxu0 0.0
  %1300 = vmatprep.mubr.f32.mxu0 0.0
  %1301 = vmatmul.mubr.f32.gmra.mxu0 %v1213
  %v1302 = vpop.f32.mrf.mxu0
  %v1303 = vadd.f32 %v1174, %v1302
  %v1304 = vpop.f32.mrf.mxu0
  %v1305 = vadd.f32 %v1174, %v1304
  %1306 = vmatprep.mubr.f32.mxu0 0.0
  %1307 = vmatmul.mubr.f32.gmra.mxu0 %v1216
  %v1308 = vpop.f32.mrf.mxu0
  %v1309 = vadd.f32 %v1179, %v1308
  %v1310 = vpop.f32.mrf.mxu0
  %v1311 = vadd.f32 %v1179, %v1310
  %1312 = vmatprep.mubr.f32.mxu0 0.0
  %1313 = vmatmul.mubr.f32.gmra.mxu0 %v1219
  %v1314 = vpop.f32.mrf.mxu0
  %v1315 = vadd.f32 %v1184, %v1314
  %v1316 = vpop.f32.mrf.mxu0
  %v1317 = vadd.f32 %v1184, %v1316
  %1318 = vmatprep.mubr.f32.mxu0 0.0
  %1319 = vmatmul.mubr.f32.gmra.mxu0 %v1222
  %v1320 = vpop.f32.mrf.mxu0
  %v1321 = vadd.f32 %v1189, %v1320
  %v1322 = vpop.f32.mrf.mxu0
  %v1323 = vadd.f32 %v1189, %v1322
  %1324 = vmatprep.mubr.f32.mxu0 0.0
  %1325 = vmatmul.mubr.f32.gmra.mxu0 %v1225
  %v1326 = vpop.f32.mrf.mxu0
  %v1327 = vadd.f32 %v1194, %v1326
  %v1328 = vpop.f32.mrf.mxu0
  %v1329 = vadd.f32 %v1194, %v1328
  %1330 = vmatprep.mubr.f32.mxu0 0.0
  %1331 = vmatmul.mubr.f32.gmra.mxu0 %v1228
  %v1332 = vpop.f32.mrf.mxu0
  %v1333 = vadd.f32 %v1199, %v1332
  %v1334 = vpop.f32.mrf.mxu0
  %v1335 = vadd.f32 %v1199, %v1334
  %1336 = vmatprep.mubr.f32.mxu0 0.0
  %1337 = vmatmul.mubr.f32.gmra.mxu0 %v1231
  %v1338 = vpop.f32.mrf.mxu0
  %v1339 = vadd.f32 %v1204, %v1338
  %v1340 = vpop.f32.mrf.mxu0
  %v1341 = vadd.f32 %v1204, %v1340
  %1342 = vmatprep.mubr.f32.mxu0 0.0
  %1343 = vmatmul.mubr.f32.gmra.mxu0 %v1234
  %v1344 = vpop.f32.mrf.mxu0
  %v1345 = vadd.f32 %v1209, %v1344
  %v1346 = vpop.f32.mrf.mxu0
  %v1347 = vadd.f32 %v1209, %v1346
  %1348 = vdwg.mxu0
  %1349 = vmatprep.subr.mxu0 0.0
  %1350 = vmatpush1.msra.mxu0 0.0
  %1351 = vmatprep.subr.mxu0 0.0
  %1352 = vmatpush1.msra.mxu0 0.0
  %1353 = vmatprep.subr.mxu0 0.0
  %1354 = vmatpush1.msra.mxu0 0.0
  %1355 = vmatprep.subr.mxu0 0.0
  %1356 = vmatpush1.msra.mxu0 0.0
  %1357 = vmatprep.subr.mxu0 0.0
  %1358 = vmatpush1.msra.mxu0 0.0
  %1359 = vmatprep.subr.mxu0 0.0
  %1360 = vmatpush1.msra.mxu0 0.0
  %1361 = vmatprep.subr.mxu0 0.0
  %1362 = vmatpush1.msra.mxu0 0.0
  %1363 = vmatprep.subr.mxu0 0.0
  %1364 = vmatpush1.msra.mxu0 0.0
  %1365 = vmatprep.subr.mxu0 0.0
  %1366 = vmatpush1.msra.mxu0 0.0
  %1367 = vmatprep.subr.mxu0 0.0
  %1368 = vmatpush1.msra.mxu0 0.0
  %1369 = vmatprep.subr.mxu0 0.0
  %1370 = vmatpush1.msra.mxu0 0.0
  %1371 = vmatprep.subr.mxu0 0.0
  %1372 = vmatpush1.msra.mxu0 0.0
  %1373 = vmatprep.subr.mxu0 %v1170
  %1374 = vmatpush1.msra.mxu0 %v1169
  %1375 = vmatprep.subr.mxu0 %v1166
  %1376 = vmatpush1.msra.mxu0 %v1165
  %1377 = vmatprep.subr.mxu0 %v1162
  %1378 = vmatpush1.msra.mxu0 %v1161
  %1379 = vmatprep.subr.mxu0 %v1158
  %1380 = vmatpush1.msra.mxu0 %v1157
  %1381 = vmatprep.subr.mxu0 0.0
  %1382 = vmatpush2.msra.mxu0 0.0
  %1383 = vmatprep.subr.mxu0 0.0
  %1384 = vmatpush2.msra.mxu0 0.0
  %1385 = vmatprep.subr.mxu0 0.0
  %1386 = vmatpush2.msra.mxu0 0.0
  %1387 = vmatprep.subr.mxu0 0.0
  %1388 = vmatpush2.msra.mxu0 0.0
  %1389 = vmatprep.subr.mxu0 0.0
  %1390 = vmatpush2.msra.mxu0 0.0
  %1391 = vmatprep.subr.mxu0 0.0
  %1392 = vmatpush2.msra.mxu0 0.0
  %1393 = vmatprep.subr.mxu0 0.0
  %1394 = vmatpush2.msra.mxu0 0.0
  %1395 = vmatprep.subr.mxu0 0.0
  %1396 = vmatpush2.msra.mxu0 0.0
  %1397 = vmatprep.subr.mxu0 0.0
  %1398 = vmatpush2.msra.mxu0 0.0
  %1399 = vmatprep.subr.mxu0 0.0
  %1400 = vmatpush2.msra.mxu0 0.0
  %1401 = vmatprep.subr.mxu0 0.0
  %1402 = vmatpush2.msra.mxu0 0.0
  %1403 = vmatprep.subr.mxu0 0.0
  %1404 = vmatpush2.msra.mxu0 0.0
  %1405 = vmatprep.subr.mxu0 0.0
  %1406 = vmatpush2.msra.mxu0 0.0
  %1407 = vmatprep.subr.mxu0 0.0
  %1408 = vmatpush2.msra.mxu0 0.0
  %1409 = vmatprep.subr.mxu0 0.0
  %1410 = vmatpush2.msra.mxu0 0.0
  %1411 = vmatprep.subr.mxu0 0.0
  %1412 = vmatpush2.msra.mxu0 0.0
  %1413 = vmatprep.mubr.f32.mxu0 0.0
  %1414 = vmatmul.mubr.f32.gmra.mxu0 %v1213
  %v1415 = vpop.f32.mrf.mxu0
  %v1416 = vadd.f32 %v1174, %v1415
  %v1417 = vpop.f32.mrf.mxu0
  %v1418 = vadd.f32 %v1174, %v1417
  %1419 = vmatprep.mubr.f32.mxu0 0.0
  %1420 = vmatmul.mubr.f32.gmra.mxu0 %v1216
  %v1421 = vpop.f32.mrf.mxu0
  %v1422 = vadd.f32 %v1179, %v1421
  %v1423 = vpop.f32.mrf.mxu0
  %v1424 = vadd.f32 %v1179, %v1423
  %1425 = vmatprep.mubr.f32.mxu0 0.0
  %1426 = vmatmul.mubr.f32.gmra.mxu0 %v1219
  %v1427 = vpop.f32.mrf.mxu0
  %v1428 = vadd.f32 %v1184, %v1427
  %v1429 = vpop.f32.mrf.mxu0
  %v1430 = vadd.f32 %v1184, %v1429
  %1431 = vmatprep.mubr.f32.mxu0 0.0
  %1432 = vmatmul.mubr.f32.gmra.mxu0 %v1222
  %v1433 = vpop.f32.mrf.mxu0
  %v1434 = vadd.f32 %v1189, %v1433
  %v1435 = vpop.f32.mrf.mxu0
  %v1436 = vadd.f32 %v1189, %v1435
  %1437 = vmatprep.mubr.f32.mxu0 0.0
  %1438 = vmatmul.mubr.f32.gmra.mxu0 %v1225
  %v1439 = vpop.f32.mrf.mxu0
  %v1440 = vadd.f32 %v1194, %v1439
  %v1441 = vpop.f32.mrf.mxu0
  %v1442 = vadd.f32 %v1194, %v1441
  %1443 = vmatprep.mubr.f32.mxu0 0.0
  %1444 = vmatmul.mubr.f32.gmra.mxu0 %v1228
  %v1445 = vpop.f32.mrf.mxu0
  %v1446 = vadd.f32 %v1199, %v1445
  %v1447 = vpop.f32.mrf.mxu0
  %v1448 = vadd.f32 %v1199, %v1447
  %1449 = vmatprep.mubr.f32.mxu0 0.0
  %1450 = vmatmul.mubr.f32.gmra.mxu0 %v1231
  %v1451 = vpop.f32.mrf.mxu0
  %v1452 = vadd.f32 %v1204, %v1451
  %v1453 = vpop.f32.mrf.mxu0
  %v1454 = vadd.f32 %v1204, %v1453
  %1455 = vmatprep.mubr.f32.mxu0 0.0
  %1456 = vmatmul.mubr.f32.gmra.mxu0 %v1234
  %v1457 = vpop.f32.mrf.mxu0
  %v1458 = vadd.f32 %v1209, %v1457
  %v1459 = vpop.f32.mrf.mxu0
  %v1460 = vadd.f32 %v1209, %v1459
  %1461 = vdwg.mxu0
  %v1462 = vmax.f32 %v1303, 0.0
  %v1463 = vmax.f32 %v1305, 0.0
  %v1464 = vmax.f32 %v1416, 0.0
  %v1465 = vmax.f32 %v1418, 0.0
  %v1466 = vmax.f32 %v1309, 0.0
  %v1467 = vmax.f32 %v1311, 0.0
  %v1468 = vmax.f32 %v1422, 0.0
  %v1469 = vmax.f32 %v1424, 0.0
  %v1470 = vmax.f32 %v1315, 0.0
  %v1471 = vmax.f32 %v1317, 0.0
  %v1472 = vmax.f32 %v1428, 0.0
  %v1473 = vmax.f32 %v1430, 0.0
  %v1474 = vmax.f32 %v1321, 0.0
  %v1475 = vmax.f32 %v1323, 0.0
  %v1476 = vmax.f32 %v1434, 0.0
  %v1477 = vmax.f32 %v1436, 0.0
  %v1478 = vmax.f32 %v1327, 0.0
  %v1479 = vmax.f32 %v1329, 0.0
  %v1480 = vmax.f32 %v1440, 0.0
  %v1481 = vmax.f32 %v1442, 0.0
  %v1482 = vmax.f32 %v1333, 0.0
  %v1483 = vmax.f32 %v1335, 0.0
  %v1484 = vmax.f32 %v1446, 0.0
  %v1485 = vmax.f32 %v1448, 0.0
  %v1486 = vmax.f32 %v1339, 0.0
  %v1487 = vmax.f32 %v1341, 0.0
  %v1488 = vmax.f32 %v1452, 0.0
  %v1489 = vmax.f32 %v1454, 0.0
  %v1490 = vmax.f32 %v1345, 0.0
  %v1491 = vmax.f32 %v1347, 0.0
  %v1492 = vmax.f32 %v1458, 0.0
  %v1493 = vmax.f32 %v1460, 0.0
  %1495 = vset.pattern.permute.xlu0 0
  %1496 = vperm.xlu0 %1495, %v75
  %v1497 = vpop.permute.xlu0 %1496
  %vm1499 = vcmask 523264
  %v1501 = vsel %vm1499, %v60, 0
  %1503 = vmatprep.subr.mxu0 0.0
  %1504 = vmatpush1.msra.mxu0 0.0
  %1505 = vmatprep.subr.mxu0 0.0
  %1506 = vmatpush1.msra.mxu0 0.0
  %1507 = vmatprep.subr.mxu0 0.0
  %1508 = vmatpush1.msra.mxu0 0.0
  %1509 = vmatprep.subr.mxu0 0.0
  %1510 = vmatpush1.msra.mxu0 0.0
  %1511 = vmatprep.subr.mxu0 0.0
  %1512 = vmatpush1.msra.mxu0 0.0
  %1513 = vmatprep.subr.mxu0 0.0
  %1514 = vmatpush1.msra.mxu0 0.0
  %1515 = vmatprep.subr.mxu0 0.0
  %1516 = vmatpush1.msra.mxu0 0.0
  %1517 = vmatprep.subr.mxu0 0.0
  %1518 = vmatpush1.msra.mxu0 0.0
  %1519 = vmatprep.subr.mxu0 %v1491
  %1520 = vmatpush1.msra.mxu0 %v1490
  %1521 = vmatprep.subr.mxu0 %v1487
  %1522 = vmatpush1.msra.mxu0 %v1486
  %1523 = vmatprep.subr.mxu0 %v1483
  %1524 = vmatpush1.msra.mxu0 %v1482
  %1525 = vmatprep.subr.mxu0 %v1479
  %1526 = vmatpush1.msra.mxu0 %v1478
  %1527 = vmatprep.subr.mxu0 %v1475
  %1528 = vmatpush1.msra.mxu0 %v1474
  %1529 = vmatprep.subr.mxu0 %v1471
  %1530 = vmatpush1.msra.mxu0 %v1470
  %1531 = vmatprep.subr.mxu0 %v1467
  %1532 = vmatpush1.msra.mxu0 %v1466
  %1533 = vmatprep.subr.mxu0 %v1463
  %1534 = vmatpush1.msra.mxu0 %v1462
  %1535 = vmatprep.subr.mxu0 0.0
  %1536 = vmatpush2.msra.mxu0 0.0
  %1537 = vmatprep.subr.mxu0 0.0
  %1538 = vmatpush2.msra.mxu0 0.0
  %1539 = vmatprep.subr.mxu0 0.0
  %1540 = vmatpush2.msra.mxu0 0.0
  %1541 = vmatprep.subr.mxu0 0.0
  %1542 = vmatpush2.msra.mxu0 0.0
  %1543 = vmatprep.subr.mxu0 0.0
  %1544 = vmatpush2.msra.mxu0 0.0
  %1545 = vmatprep.subr.mxu0 0.0
  %1546 = vmatpush2.msra.mxu0 0.0
  %1547 = vmatprep.subr.mxu0 0.0
  %1548 = vmatpush2.msra.mxu0 0.0
  %1549 = vmatprep.subr.mxu0 0.0
  %1550 = vmatpush2.msra.mxu0 0.0
  %1551 = vmatprep.subr.mxu0 0.0
  %1552 = vmatpush2.msra.mxu0 0.0
  %1553 = vmatprep.subr.mxu0 0.0
  %1554 = vmatpush2.msra.mxu0 0.0
  %1555 = vmatprep.subr.mxu0 0.0
  %1556 = vmatpush2.msra.mxu0 0.0
  %1557 = vmatprep.subr.mxu0 0.0
  %1558 = vmatpush2.msra.mxu0 0.0
  %1559 = vmatprep.subr.mxu0 0.0
  %1560 = vmatpush2.msra.mxu0 0.0
  %1561 = vmatprep.subr.mxu0 0.0
  %1562 = vmatpush2.msra.mxu0 0.0
  %1563 = vmatprep.subr.mxu0 0.0
  %1564 = vmatpush2.msra.mxu0 0.0
  %1565 = vmatprep.subr.mxu0 0.0
  %1566 = vmatpush2.msra.mxu0 0.0
  %1567 = vmatprep.mubr.f32.mxu0 0.0
  %1568 = vmatmul.mubr.f32.gmra.mxu0 %v1501
  %v1569 = vpop.f32.mrf.mxu0
  %v1570 = vadd.f32 %v1497, %v1569
  %v1571 = vpop.f32.mrf.mxu0
  %v1572 = vadd.f32 %v1497, %v1571
  %1573 = vdwg.mxu0
  %1574 = vmatprep.subr.mxu0 0.0
  %1575 = vmatpush1.msra.mxu0 0.0
  %1576 = vmatprep.subr.mxu0 0.0
  %1577 = vmatpush1.msra.mxu0 0.0
  %1578 = vmatprep.subr.mxu0 0.0
  %1579 = vmatpush1.msra.mxu0 0.0
  %1580 = vmatprep.subr.mxu0 0.0
  %1581 = vmatpush1.msra.mxu0 0.0
  %1582 = vmatprep.subr.mxu0 0.0
  %1583 = vmatpush1.msra.mxu0 0.0
  %1584 = vmatprep.subr.mxu0 0.0
  %1585 = vmatpush1.msra.mxu0 0.0
  %1586 = vmatprep.subr.mxu0 0.0
  %1587 = vmatpush1.msra.mxu0 0.0
  %1588 = vmatprep.subr.mxu0 0.0
  %1589 = vmatpush1.msra.mxu0 0.0
  %1590 = vmatprep.subr.mxu0 %v1493
  %1591 = vmatpush1.msra.mxu0 %v1492
  %1592 = vmatprep.subr.mxu0 %v1489
  %1593 = vmatpush1.msra.mxu0 %v1488
  %1594 = vmatprep.subr.mxu0 %v1485
  %1595 = vmatpush1.msra.mxu0 %v1484
  %1596 = vmatprep.subr.mxu0 %v1481
  %1597 = vmatpush1.msra.mxu0 %v1480
  %1598 = vmatprep.subr.mxu0 %v1477
  %1599 = vmatpush1.msra.mxu0 %v1476
  %1600 = vmatprep.subr.mxu0 %v1473
  %1601 = vmatpush1.msra.mxu0 %v1472
  %1602 = vmatprep.subr.mxu0 %v1469
  %1603 = vmatpush1.msra.mxu0 %v1468
  %1604 = vmatprep.subr.mxu0 %v1465
  %1605 = vmatpush1.msra.mxu0 %v1464
  %1606 = vmatprep.subr.mxu0 0.0
  %1607 = vmatpush2.msra.mxu0 0.0
  %1608 = vmatprep.subr.mxu0 0.0
  %1609 = vmatpush2.msra.mxu0 0.0
  %1610 = vmatprep.subr.mxu0 0.0
  %1611 = vmatpush2.msra.mxu0 0.0
  %1612 = vmatprep.subr.mxu0 0.0
  %1613 = vmatpush2.msra.mxu0 0.0
  %1614 = vmatprep.subr.mxu0 0.0
  %1615 = vmatpush2.msra.mxu0 0.0
  %1616 = vmatprep.subr.mxu0 0.0
  %1617 = vmatpush2.msra.mxu0 0.0
  %1618 = vmatprep.subr.mxu0 0.0
  %1619 = vmatpush2.msra.mxu0 0.0
  %1620 = vmatprep.subr.mxu0 0.0
  %1621 = vmatpush2.msra.mxu0 0.0
  %1622 = vmatprep.subr.mxu0 0.0
  %1623 = vmatpush2.msra.mxu0 0.0
  %1624 = vmatprep.subr.mxu0 0.0
  %1625 = vmatpush2.msra.mxu0 0.0
  %1626 = vmatprep.subr.mxu0 0.0
  %1627 = vmatpush2.msra.mxu0 0.0
  %1628 = vmatprep.subr.mxu0 0.0
  %1629 = vmatpush2.msra.mxu0 0.0
  %1630 = vmatprep.subr.mxu0 0.0
  %1631 = vmatpush2.msra.mxu0 0.0
  %1632 = vmatprep.subr.mxu0 0.0
  %1633 = vmatpush2.msra.mxu0 0.0
  %1634 = vmatprep.subr.mxu0 0.0
  %1635 = vmatpush2.msra.mxu0 0.0
  %1636 = vmatprep.subr.mxu0 0.0
  %1637 = vmatpush2.msra.mxu0 0.0
  %1638 = vmatprep.mubr.f32.mxu0 0.0
  %1639 = vmatmul.mubr.f32.gmra.mxu0 %v1501
  %v1640 = vpop.f32.mrf.mxu0
  %v1641 = vadd.f32 %v1497, %v1640
  %v1642 = vpop.f32.mrf.mxu0
  %v1643 = vadd.f32 %v1497, %v1642
  %1644 = vdwg.mxu0
  %1645 = vst [vmem:[%s4] sm:$0xff] %v1570
  %1646 = vst [vmem:[%s4 + $0x8] sm:$0xff] %v1572
  %1647 = vst [vmem:[%s4 + $0x10] sm:$0xff] %v1641
  %1648 = vst [vmem:[%s4 + $0x18] sm:$0xff] %v1643
  // Predicated region
  $region18: #{fwd.1} parent=0 // pred_check
    _
  $region19: #{fwd.1} parent=0 // pred_check_branch
    %1650 = sbr.rel (0) target = $region21
  $region20: #{fwd.1} parent=0 // pred_region
    _
  $region21: #{fwd.1} parent=0 // pred_fallthru
    _
  // Predicated region
  $region22: #{fwd.1} parent=0 // pred_check
    _
  $region23: #{fwd.1} parent=0 // pred_check_branch
    %1652 = sbr.rel (0) target = $region25
  $region24: #{fwd.1} parent=0 // pred_region
    _
  $region25: #{fwd.1} parent=0 // pred_fallthru
    _

</llo_original>
